<compile_context>
chip_gen: v6e
topology: v6e:2x2x1
jax: 0.10.0
libtpu: 0.0.40
codegen_flags: <defaults>
</compile_context>

<pallas_src>
import numpy as np
import jax
import jax.numpy as jnp
from jax.experimental import pallas as pl
from jax.experimental.pallas import tpu as pltpu


# ------------------------------ fused kernel --------------------------------

def _make_fused_kernel(N, Cin, Cout, H, W):
    Chalf = Cin // 2
    Hu, Wu = 2 * H, 2 * W
    S = Hu * Wu                                  # flattened upsampled spatial (lanes)
    PAD = ((Wu + 1 + 127) // 128) * 128          # lane-aligned halo >= Wu+1
    R_up = N * Chalf                             # rows of conv-transpose output
    R_cat = N * Cin                              # rows of concat([y, up])
    R_out = N * Cout                             # rows of conv1/conv2 outputs
    inv_cnt = 1.0 / float(N * S)                 # 1 / elements per BN channel

    def kernel(x_ref, y_ref, gp_ref, mrows_ref, wtc_ref, bt_ref,
               pair_ref, gam_ref, bet_ref, lm_ref, rm_ref,
               w1_ref, b1_ref, w2_ref, b2_ref,
               out_ref, pad1_ref, pad2_ref):
        f32 = jnp.float32
        lm = lm_ref[...]                         # (1,S) 0. on left image border
        rm = rm_ref[...]                         # (1,S) 0. on right image border

        # --- zero only the halo columns (interiors are fully overwritten) ----
        pad1_ref[:, 0:PAD] = jnp.zeros((R_cat, PAD), f32)
        pad1_ref[:, PAD + S:PAD + S + PAD] = jnp.zeros((R_cat, PAD), f32)
        pad2_ref[:, 0:PAD] = jnp.zeros((R_out, PAD), f32)
        pad2_ref[:, PAD + S:PAD + S + PAD] = jnp.zeros((R_out, PAD), f32)

        # --- ConvTranspose2d(kernel=2, stride=2): 2 MXU pushes, no selects ---
        # xe   : NN-gathered low-res input on the upsampled lane grid
        # xe4  : xe replicated 4x along sublanes, zeroed by parity (host const)
        # up   : one deep-K matmul folds all 4 taps + block-diag batch weights
        xe = jnp.dot(x_ref[...], gp_ref[...], preferred_element_type=f32)     # (N*Cin,S)
        xe4 = jnp.concatenate([xe, xe, xe, xe], axis=0) * mrows_ref[...]      # (4*N*Cin,S)
        up = jnp.dot(wtc_ref[...], xe4,
                     preferred_element_type=f32) + bt_ref[...]                # (R_up,S)

        # --- concat([y, up]) + BatchNorm2d (training-mode batch stats) -------
        cat = jnp.concatenate([y_ref[...], up], axis=0)                       # (R_cat,S)
        rs = jnp.sum(cat, axis=1, keepdims=True)                              # (R_cat,1)
        mean = jnp.dot(pair_ref[...], rs, preferred_element_type=f32) * inv_cnt
        cen = cat - mean
        rq = jnp.sum(cen * cen, axis=1, keepdims=True)
        var = jnp.dot(pair_ref[...], rq, preferred_element_type=f32) * inv_cnt
        bn = cen * (jax.lax.rsqrt(var + 1e-5) * gam_ref[...]) + bet_ref[...]
        pad1_ref[:, PAD:PAD + S] = bn            # single lane-aligned store

        # --- 3x3 'same' conv + bias + ReLU as ONE deep-K matmul --------------
        def conv3x3_relu(src_ref, w_big, b_rows):
            pieces = []
            for kh in range(3):
                for kw in range(3):
                    dh, dw = kh - 1, kw - 1
                    sh = dh * Wu + dw
                    piece = src_ref[:, PAD + sh:PAD + sh + S]                 # (R_in,S)
                    if dw == -1:                 # left column wraps -> mask
                        piece = piece * lm
                    elif dw == 1:                # right column wraps -> mask
                        piece = piece * rm
                    pieces.append(piece)
            patches = jnp.concatenate(pieces, axis=0)                         # (9*R_in,S)
            o = jnp.dot(w_big, patches, preferred_element_type=f32) + b_rows
            return jnp.maximum(o, 0.0)

        h1 = conv3x3_relu(pad1_ref, w1_ref[...], b1_ref[...])                 # (R_out,S)
        pad2_ref[:, PAD:PAD + S] = h1            # lane-aligned store
        out_ref[...] = conv3x3_relu(pad2_ref, w2_ref[...],
                                    b2_ref[...]).astype(out_ref.dtype)

    return kernel, PAD


# --------------------------------- wrapper ----------------------------------

def alexnet_upsampling_forward(x_nchw, y_nchw, p):
    """Matches AlexNetUpsampling.forward(x, y).  x: (N,Cin,H,W); y: (N,Cin//2,2H,2W)."""
    N, Cin, H, W = x_nchw.shape
    Chalf = Cin // 2
    Cout = p["w1"].shape[0]
    Hu, Wu = 2 * H, 2 * W
    S = Hu * Wu
    R_up, R_cat, R_out = N * Chalf, N * Cin, N * Cout

    # --- activations: free contiguous reshapes only ---------------------------
    x2 = x_nchw.reshape(N * Cin, H * W)
    y2 = y_nchw.reshape(R_up, S)

    # --- static index constants (numpy, folded by XLA) ------------------------
    q = np.arange(S)
    hq, wq = q // Wu, q % Wu
    gp = np.zeros((H * W, S), np.float32)                 # NN-upsample gather matrix
    gp[(hq // 2) * W + (wq // 2), q] = 1.0
    # parity masks for the 4 conv-transpose taps, replicated per input row
    pmask = np.zeros((4, S), np.float32)
    for kh in range(2):
        for kw in range(2):
            pmask[kh * 2 + kw] = ((hq % 2 == kh) & (wq % 2 == kw)).astype(np.float32)
    maskrows = np.repeat(pmask, N * Cin, axis=0)          # (4*N*Cin, S)
    # 3x3 conv left/right border masks (hoisted out of the tap loop)
    lmask = (wq >= 1).astype(np.float32).reshape(1, S)
    rmask = (wq <= Wu - 2).astype(np.float32).reshape(1, S)

    # row -> (batch, BN-channel) bookkeeping for the concatenated tensor [y; up]
    n_cat = np.array([n for n in range(N) for _ in range(Chalf)] * 2)
    ch_cat = np.array([c for _ in range(N) for c in range(Chalf)]
                      + [Chalf + c for _ in range(N) for c in range(Chalf)])
    pair = (ch_cat[:, None] == ch_cat[None, :]).astype(np.float32)
    n_out = np.repeat(np.arange(N), Cout)
    ch_out = np.tile(np.arange(Cout), N)

    # --- parameter repacking (tiny, one-time XLA work) -------------------------
    def blockdiag(m):                                     # kron(eye(N), m)
        a, b = m.shape
        return (jnp.eye(N, dtype=m.dtype)[:, None, :, None]
                * m[None, :, None, :]).reshape(N * a, N * b)

    # conv-transpose weights: all 4 taps concatenated along K -> (R_up, 4*N*Cin)
    wtcols = jnp.concatenate([blockdiag(p["wt"][:, :, kh, kw].T)
                              for kh in range(2) for kw in range(2)], axis=1)
    bt_rows = jnp.tile(p["bt"], N).reshape(R_up, 1)

    def conv_big(w, n_map, ch_map):
        CO, CI = w.shape[0], w.shape[1]
        R = len(ch_map)
        w_taps = jnp.transpose(w, (2, 3, 1, 0)).reshape(9, CI, CO)       # (tap, ci, co)
        cols = w_taps[:, jnp.asarray(ch_map), :]                         # (tap, row, co)
        nmask = jnp.asarray(
            (np.arange(N)[:, None] == np.asarray(n_map)[None, :]).astype(np.float32))
        return jnp.einsum('trc,nr->nctr', cols, nmask).reshape(N * CO, 9 * R)

    w1_big = conv_big(p["w1"], n_cat, ch_cat)                            # (R_out, 9*R_cat)
    w2_big = conv_big(p["w2"], n_out, ch_out)                            # (R_out, 9*R_out)
    b1_rows = jnp.tile(p["b1"], N).reshape(R_out, 1)
    b2_rows = jnp.tile(p["b2"], N).reshape(R_out, 1)
    gam_rows = p["gamma"][jnp.asarray(ch_cat)].reshape(R_cat, 1)
    bet_rows = p["beta"][jnp.asarray(ch_cat)].reshape(R_cat, 1)

    inputs = (x2, y2, jnp.asarray(gp), jnp.asarray(maskrows), wtcols, bt_rows,
              jnp.asarray(pair), gam_rows, bet_rows,
              jnp.asarray(lmask), jnp.asarray(rmask),
              w1_big, b1_rows, w2_big, b2_rows)

    def full_spec(a):
        nd = a.ndim
        return pl.BlockSpec(a.shape, lambda i, _n=nd: (0,) * _n)

    kernel, PAD = _make_fused_kernel(N, Cin, Cout, H, W)
    out = pl.pallas_call(
        kernel,
        out_shape=jax.ShapeDtypeStruct((R_out, S), x_nchw.dtype),
        grid=(1,),
        in_specs=[full_spec(a) for a in inputs],
        out_specs=pl.BlockSpec((R_out, S), lambda i: (0, 0)),
        scratch_shapes=[pltpu.VMEM((R_cat, S + 2 * PAD), jnp.float32),
                        pltpu.VMEM((R_out, S + 2 * PAD), jnp.float32)],
        compiler_params=pltpu.CompilerParams(dimension_semantics=("arbitrary",)),
    )(*inputs)
    return out.reshape(N, Cout, Hu, Wu)


# --------------------------- pure-JAX reference ------------------------------

def reference_forward(x, y, p):
    hi = jax.lax.Precision.HIGHEST
    w_flip = p["wt"][:, :, ::-1, ::-1]
    up = jax.lax.conv_general_dilated(
        x, w_flip, window_strides=(1, 1), padding=((1, 1), (1, 1)),
        lhs_dilation=(2, 2), dimension_numbers=("NCHW", "IOHW", "NCHW"),
        precision=hi) + p["bt"][None, :, None, None]
    cat = jnp.concatenate([y, up], axis=1)
    mean = jnp.mean(cat, axis=(0, 2, 3), keepdims=True)
    var = jnp.mean(jnp.square(cat - mean), axis=(0, 2, 3), keepdims=True)
    bn = (cat - mean) * jax.lax.rsqrt(var + 1e-5)
    bn = bn * p["gamma"][None, :, None, None] + p["beta"][None, :, None, None]

    def conv(x_, w_, b_):
        return jax.lax.conv_general_dilated(
            x_, w_, (1, 1), "SAME", dimension_numbers=("NCHW", "OIHW", "NCHW"),
            precision=hi) + b_[None, :, None, None]

    h1 = jnp.maximum(conv(bn, p["w1"], p["b1"]), 0.0)
    return jnp.maximum(conv(h1, p["w2"], p["b2"]), 0.0)


# --------------------------------- main --------------------------------------

if __name__ == "__main__":
    key = jax.random.PRNGKey(0)
    in_channels, out_channels = 4, 4
    N, H, W = 2, 8, 8
    ks = jax.random.split(key, 10)

    x = jax.random.normal(ks[0], (N, in_channels, H, W), jnp.float32)
    y = jax.random.normal(ks[1], (N, in_channels // 2, 2 * H, 2 * W), jnp.float32)

    params = {
        # ConvTranspose2d(in_channels, in_channels//2, k=2, s=2)
        "wt": 0.3 * jax.random.normal(ks[2], (in_channels, in_channels // 2, 2, 2), jnp.float32),
        "bt": 0.1 * jax.random.normal(ks[3], (in_channels // 2,), jnp.float32),
        # BatchNorm2d(in_channels)
        "gamma": 1.0 + 0.1 * jax.random.normal(ks[4], (in_channels,), jnp.float32),
        "beta": 0.1 * jax.random.normal(ks[5], (in_channels,), jnp.float32),
        # Conv2d(in_channels, out_channels, 3, padding='same')
        "w1": 0.2 * jax.random.normal(ks[6], (out_channels, in_channels, 3, 3), jnp.float32),
        "b1": 0.1 * jax.random.normal(ks[7], (out_channels,), jnp.float32),
        # Conv2d(out_channels, out_channels, 3, padding='same')
        "w2": 0.2 * jax.random.normal(ks[8], (out_channels, out_channels, 3, 3), jnp.float32),
        "b2": 0.1 * jax.random.normal(ks[9], (out_channels,), jnp.float32),
    }

    fwd = jax.jit(alexnet_upsampling_forward)
    out = jax.block_until_ready(fwd(x, y, params))
    ref = jax.block_until_ready(reference_forward(x, y, params))

    assert out.shape == (N, out_channels, 2 * H, 2 * W), out.shape
    max_err = float(jnp.max(jnp.abs(out - ref)))
    if max_err > 1e-3:
        raise AssertionError(f"Pallas result mismatch vs reference, max abs err={max_err}")

    print("KERNEL_OK")
</pallas_src>

<mosaic_0001>
module attributes {stable_mosaic.version = 11 : i64} {
  func.func @kernel(%arg0: i32, %arg1: memref<8x64xf32, #tpu.memory_space<vmem>>, %arg2: memref<4x256xf32, #tpu.memory_space<vmem>>, %arg3: memref<64x256xf32, #tpu.memory_space<vmem>>, %arg4: memref<32x256xf32, #tpu.memory_space<vmem>>, %arg5: memref<4x32xf32, #tpu.memory_space<vmem>>, %arg6: memref<4x1xf32, #tpu.memory_space<vmem>>, %arg7: memref<8x8xf32, #tpu.memory_space<vmem>>, %arg8: memref<8x1xf32, #tpu.memory_space<vmem>>, %arg9: memref<8x1xf32, #tpu.memory_space<vmem>>, %arg10: memref<1x256xf32, #tpu.memory_space<vmem>>, %arg11: memref<1x256xf32, #tpu.memory_space<vmem>>, %arg12: memref<8x72xf32, #tpu.memory_space<vmem>>, %arg13: memref<8x1xf32, #tpu.memory_space<vmem>>, %arg14: memref<8x72xf32, #tpu.memory_space<vmem>>, %arg15: memref<8x1xf32, #tpu.memory_space<vmem>>, %arg16: memref<8x256xf32, #tpu.memory_space<vmem>>, %arg17: memref<8x512xf32, #tpu.memory_space<vmem>>, %arg18: memref<8x512xf32, #tpu.memory_space<vmem>>) attributes {dimension_semantics = [#tpu.dimension_semantics<arbitrary>], iteration_bounds = array<i64: 1>, scalar_prefetch = 0 : i64, scratch_operands = 2 : i64, tpu.core_type = #tpu.core_type<tc>, window_params = [{pipeline_mode = #tpu.pipeline_mode<synchronous>, transform_indices = @transform_0, window_bounds = array<i64: 8, 64>}, {pipeline_mode = #tpu.pipeline_mode<synchronous>, transform_indices = @transform_1, window_bounds = array<i64: 4, 256>}, {pipeline_mode = #tpu.pipeline_mode<synchronous>, transform_indices = @transform_2, window_bounds = array<i64: 64, 256>}, {pipeline_mode = #tpu.pipeline_mode<synchronous>, transform_indices = @transform_3, window_bounds = array<i64: 32, 256>}, {pipeline_mode = #tpu.pipeline_mode<synchronous>, transform_indices = @transform_4, window_bounds = array<i64: 4, 32>}, {pipeline_mode = #tpu.pipeline_mode<synchronous>, transform_indices = @transform_5, window_bounds = array<i64: 4, 1>}, {pipeline_mode = #tpu.pipeline_mode<synchronous>, transform_indices = @transform_6, window_bounds = array<i64: 8, 8>}, {pipeline_mode = #tpu.pipeline_mode<synchronous>, transform_indices = @transform_7, window_bounds = array<i64: 8, 1>}, {pipeline_mode = #tpu.pipeline_mode<synchronous>, transform_indices = @transform_8, window_bounds = array<i64: 8, 1>}, {pipeline_mode = #tpu.pipeline_mode<synchronous>, transform_indices = @transform_9, window_bounds = array<i64: 1, 256>}, {pipeline_mode = #tpu.pipeline_mode<synchronous>, transform_indices = @transform_10, window_bounds = array<i64: 1, 256>}, {pipeline_mode = #tpu.pipeline_mode<synchronous>, transform_indices = @transform_11, window_bounds = array<i64: 8, 72>}, {pipeline_mode = #tpu.pipeline_mode<synchronous>, transform_indices = @transform_12, window_bounds = array<i64: 8, 1>}, {pipeline_mode = #tpu.pipeline_mode<synchronous>, transform_indices = @transform_13, window_bounds = array<i64: 8, 72>}, {pipeline_mode = #tpu.pipeline_mode<synchronous>, transform_indices = @transform_14, window_bounds = array<i64: 8, 1>}, {pipeline_mode = #tpu.pipeline_mode<synchronous>, transform_indices = @transform_15, window_bounds = array<i64: 8, 256>}]} {
    %c0 = arith.constant 0 : index
    %c0_0 = arith.constant 0 : index
    %0 = vector.load %arg10[%c0, %c0_0] : memref<1x256xf32, #tpu.memory_space<vmem>>, vector<1x256xf32>
    %c0_1 = arith.constant 0 : index
    %c0_2 = arith.constant 0 : index
    %1 = vector.load %arg11[%c0_1, %c0_2] : memref<1x256xf32, #tpu.memory_space<vmem>>, vector<1x256xf32>
    %cst = arith.constant 0.000000e+00 : f32
    %2 = vector.broadcast %cst : f32 to vector<8x128xf32>
    %c0_3 = arith.constant 0 : index
    %c0_4 = arith.constant 0 : index
    %3 = vector.load %arg17[%c0_3, %c0_4] : memref<8x512xf32, #tpu.memory_space<vmem>>, vector<8x128xf32>
    tpu.vector_store %arg17[%c0_3, %c0_4], %2 {strides = array<i32>} : memref<8x512xf32, #tpu.memory_space<vmem>>, vector<8x128xf32>,
    %cst_5 = arith.constant 0.000000e+00 : f32
    %4 = vector.broadcast %cst_5 : f32 to vector<8x128xf32>
    %c0_6 = arith.constant 0 : index
    %c384 = arith.constant 384 : index
    %5 = vector.load %arg17[%c0_6, %c384] : memref<8x512xf32, #tpu.memory_space<vmem>>, vector<8x128xf32>
    tpu.vector_store %arg17[%c0_6, %c384], %4 {strides = array<i32>} : memref<8x512xf32, #tpu.memory_space<vmem>>, vector<8x128xf32>,
    %cst_7 = arith.constant 0.000000e+00 : f32
    %6 = vector.broadcast %cst_7 : f32 to vector<8x128xf32>
    %c0_8 = arith.constant 0 : index
    %c0_9 = arith.constant 0 : index
    %7 = vector.load %arg18[%c0_8, %c0_9] : memref<8x512xf32, #tpu.memory_space<vmem>>, vector<8x128xf32>
    tpu.vector_store %arg18[%c0_8, %c0_9], %6 {strides = array<i32>} : memref<8x512xf32, #tpu.memory_space<vmem>>, vector<8x128xf32>,
    %cst_10 = arith.constant 0.000000e+00 : f32
    %8 = vector.broadcast %cst_10 : f32 to vector<8x128xf32>
    %c0_11 = arith.constant 0 : index
    %c384_12 = arith.constant 384 : index
    %9 = vector.load %arg18[%c0_11, %c384_12] : memref<8x512xf32, #tpu.memory_space<vmem>>, vector<8x128xf32>
    tpu.vector_store %arg18[%c0_11, %c384_12], %8 {strides = array<i32>} : memref<8x512xf32, #tpu.memory_space<vmem>>, vector<8x128xf32>,
    %c0_13 = arith.constant 0 : index
    %c0_14 = arith.constant 0 : index
    %10 = vector.load %arg1[%c0_13, %c0_14] : memref<8x64xf32, #tpu.memory_space<vmem>>, vector<8x64xf32>
    %c0_15 = arith.constant 0 : index
    %c0_16 = arith.constant 0 : index
    %11 = vector.load %arg3[%c0_15, %c0_16] : memref<64x256xf32, #tpu.memory_space<vmem>>, vector<64x256xf32>
    %cst_17 = arith.constant dense<0.000000e+00> : vector<8x256xf32>
    %12 = tpu.matmul %10, %11, %cst_17 {dimension_numbers = #tpu.dot_dimension_numbers<[1], [0], [0], [1], [0, 0, 1, 1], [], []>} : vector<8x64xf32>, vector<64x256xf32>, vector<8x256xf32> -> vector<8x256xf32>
    %13 = tpu.concatenate %12, %12, %12, %12 in 0 : vector<8x256xf32>, vector<8x256xf32>, vector<8x256xf32>, vector<8x256xf32> -> vector<32x256xf32>
    %c0_18 = arith.constant 0 : index
    %c0_19 = arith.constant 0 : index
    %14 = vector.load %arg4[%c0_18, %c0_19] : memref<32x256xf32, #tpu.memory_space<vmem>>, vector<32x256xf32>
    %15 = arith.mulf %13, %14 : vector<32x256xf32>
    %c0_20 = arith.constant 0 : index
    %c0_21 = arith.constant 0 : index
    %16 = vector.load %arg5[%c0_20, %c0_21] : memref<4x32xf32, #tpu.memory_space<vmem>>, vector<4x32xf32>
    %cst_22 = arith.constant dense<0.000000e+00> : vector<4x256xf32>
    %17 = tpu.matmul %16, %15, %cst_22 {dimension_numbers = #tpu.dot_dimension_numbers<[1], [0], [0], [1], [0, 0, 1, 1], [], []>} : vector<4x32xf32>, vector<32x256xf32>, vector<4x256xf32> -> vector<4x256xf32>
    %c0_23 = arith.constant 0 : index
    %c0_24 = arith.constant 0 : index
    %18 = vector.load %arg6[%c0_23, %c0_24] : memref<4x1xf32, #tpu.memory_space<vmem>>, vector<4x1xf32>
    %19 = vector.broadcast %18 : vector<4x1xf32> to vector<4x256xf32>
    %20 = arith.addf %17, %19 : vector<4x256xf32>
    %c0_25 = arith.constant 0 : index
    %c0_26 = arith.constant 0 : index
    %21 = vector.load %arg2[%c0_25, %c0_26] : memref<4x256xf32, #tpu.memory_space<vmem>>, vector<4x256xf32>
    %22 = tpu.concatenate %21, %20 in 0 : vector<4x256xf32>, vector<4x256xf32> -> vector<8x256xf32>
    %cst_27 = arith.constant dense<0.000000e+00> : vector<8xf32>
    %23 = vector.multi_reduction <add>, %22, %cst_27 [1] : vector<8x256xf32> to vector<8xf32>
    %24 = vector.shape_cast %23 : vector<8xf32> to vector<8x1xf32>
    %c0_28 = arith.constant 0 : index
    %c0_29 = arith.constant 0 : index
    %25 = vector.load %arg7[%c0_28, %c0_29] : memref<8x8xf32, #tpu.memory_space<vmem>>, vector<8x8xf32>
    %cst_30 = arith.constant dense<0.000000e+00> : vector<8x1xf32>
    %26 = tpu.matmul %25, %24, %cst_30 {dimension_numbers = #tpu.dot_dimension_numbers<[1], [0], [0], [1], [0, 0, 1, 1], [], []>} : vector<8x8xf32>, vector<8x1xf32>, vector<8x1xf32> -> vector<8x1xf32>
    %cst_31 = arith.constant 0.001953125 : f32
    %27 = vector.broadcast %cst_31 : f32 to vector<8x1xf32>
    %28 = arith.mulf %26, %27 : vector<8x1xf32>
    %29 = vector.broadcast %28 : vector<8x1xf32> to vector<8x256xf32>
    %30 = arith.subf %22, %29 : vector<8x256xf32>
    %31 = arith.mulf %30, %30 : vector<8x256xf32>
    %cst_32 = arith.constant dense<0.000000e+00> : vector<8xf32>
    %32 = vector.multi_reduction <add>, %31, %cst_32 [1] : vector<8x256xf32> to vector<8xf32>
    %33 = vector.shape_cast %32 : vector<8xf32> to vector<8x1xf32>
    %c0_33 = arith.constant 0 : index
    %c0_34 = arith.constant 0 : index
    %34 = vector.load %arg7[%c0_33, %c0_34] : memref<8x8xf32, #tpu.memory_space<vmem>>, vector<8x8xf32>
    %cst_35 = arith.constant dense<0.000000e+00> : vector<8x1xf32>
    %35 = tpu.matmul %34, %33, %cst_35 {dimension_numbers = #tpu.dot_dimension_numbers<[1], [0], [0], [1], [0, 0, 1, 1], [], []>} : vector<8x8xf32>, vector<8x1xf32>, vector<8x1xf32> -> vector<8x1xf32>
    %cst_36 = arith.constant 0.001953125 : f32
    %36 = vector.broadcast %cst_36 : f32 to vector<8x1xf32>
    %37 = arith.mulf %35, %36 : vector<8x1xf32>
    %cst_37 = arith.constant 9.99999974E-6 : f32
    %38 = vector.broadcast %cst_37 : f32 to vector<8x1xf32>
    %39 = arith.addf %37, %38 : vector<8x1xf32>
    %40 = math.rsqrt %39 : vector<8x1xf32>
    %c0_38 = arith.constant 0 : index
    %c0_39 = arith.constant 0 : index
    %41 = vector.load %arg8[%c0_38, %c0_39] : memref<8x1xf32, #tpu.memory_space<vmem>>, vector<8x1xf32>
    %42 = arith.mulf %40, %41 : vector<8x1xf32>
    %43 = vector.broadcast %42 : vector<8x1xf32> to vector<8x256xf32>
    %44 = arith.mulf %30, %43 : vector<8x256xf32>
    %c0_40 = arith.constant 0 : index
    %c0_41 = arith.constant 0 : index
    %45 = vector.load %arg9[%c0_40, %c0_41] : memref<8x1xf32, #tpu.memory_space<vmem>>, vector<8x1xf32>
    %46 = vector.broadcast %45 : vector<8x1xf32> to vector<8x256xf32>
    %47 = arith.addf %44, %46 : vector<8x256xf32>
    %c0_42 = arith.constant 0 : index
    %c128 = arith.constant 128 : index
    %48 = vector.load %arg17[%c0_42, %c128] : memref<8x512xf32, #tpu.memory_space<vmem>>, vector<8x256xf32>
    tpu.vector_store %arg17[%c0_42, %c128], %47 {strides = array<i32>} : memref<8x512xf32, #tpu.memory_space<vmem>>, vector<8x256xf32>,
    %c0_43 = arith.constant 0 : index
    %c0_44 = arith.constant 0 : index
    %49 = vector.load %arg12[%c0_43, %c0_44] : memref<8x72xf32, #tpu.memory_space<vmem>>, vector<8x72xf32>
    %c0_45 = arith.constant 0 : index
    %c0_46 = arith.constant 0 : index
    %50 = vector.load %arg13[%c0_45, %c0_46] : memref<8x1xf32, #tpu.memory_space<vmem>>, vector<8x1xf32>
    %c0_47 = arith.constant 0 : index
    %c111 = arith.constant 111 : index
    %51 = vector.load %arg17[%c0_47, %c111] : memref<8x512xf32, #tpu.memory_space<vmem>>, vector<8x256xf32>
    %52 = vector.broadcast %0 : vector<1x256xf32> to vector<8x256xf32>
    %53 = arith.mulf %51, %52 : vector<8x256xf32>
    %c0_48 = arith.constant 0 : index
    %c112 = arith.constant 112 : index
    %54 = vector.load %arg17[%c0_48, %c112] : memref<8x512xf32, #tpu.memory_space<vmem>>, vector<8x256xf32>
    %c0_49 = arith.constant 0 : index
    %c113 = arith.constant 113 : index
    %55 = vector.load %arg17[%c0_49, %c113] : memref<8x512xf32, #tpu.memory_space<vmem>>, vector<8x256xf32>
    %56 = vector.broadcast %1 : vector<1x256xf32> to vector<8x256xf32>
    %57 = arith.mulf %55, %56 : vector<8x256xf32>
    %c0_50 = arith.constant 0 : index
    %c127 = arith.constant 127 : index
    %58 = vector.load %arg17[%c0_50, %c127] : memref<8x512xf32, #tpu.memory_space<vmem>>, vector<8x256xf32>
    %59 = vector.broadcast %0 : vector<1x256xf32> to vector<8x256xf32>
    %60 = arith.mulf %58, %59 : vector<8x256xf32>
    %c0_51 = arith.constant 0 : index
    %c128_52 = arith.constant 128 : index
    %61 = vector.load %arg17[%c0_51, %c128_52] : memref<8x512xf32, #tpu.memory_space<vmem>>, vector<8x256xf32>
    %c0_53 = arith.constant 0 : index
    %c129 = arith.constant 129 : index
    %62 = vector.load %arg17[%c0_53, %c129] : memref<8x512xf32, #tpu.memory_space<vmem>>, vector<8x256xf32>
    %63 = vector.broadcast %1 : vector<1x256xf32> to vector<8x256xf32>
    %64 = arith.mulf %62, %63 : vector<8x256xf32>
    %c0_54 = arith.constant 0 : index
    %c143 = arith.constant 143 : index
    %65 = vector.load %arg17[%c0_54, %c143] : memref<8x512xf32, #tpu.memory_space<vmem>>, vector<8x256xf32>
    %66 = vector.broadcast %0 : vector<1x256xf32> to vector<8x256xf32>
    %67 = arith.mulf %65, %66 : vector<8x256xf32>
    %c0_55 = arith.constant 0 : index
    %c144 = arith.constant 144 : index
    %68 = vector.load %arg17[%c0_55, %c144] : memref<8x512xf32, #tpu.memory_space<vmem>>, vector<8x256xf32>
    %c0_56 = arith.constant 0 : index
    %c145 = arith.constant 145 : index
    %69 = vector.load %arg17[%c0_56, %c145] : memref<8x512xf32, #tpu.memory_space<vmem>>, vector<8x256xf32>
    %70 = vector.broadcast %1 : vector<1x256xf32> to vector<8x256xf32>
    %71 = arith.mulf %69, %70 : vector<8x256xf32>
    %72 = tpu.concatenate %53, %54, %57, %60, %61, %64, %67, %68, %71 in 0 : vector<8x256xf32>, vector<8x256xf32>, vector<8x256xf32>, vector<8x256xf32>, vector<8x256xf32>, vector<8x256xf32>, vector<8x256xf32>, vector<8x256xf32>, vector<8x256xf32> -> vector<72x256xf32>
    %cst_57 = arith.constant dense<0.000000e+00> : vector<8x256xf32>
    %73 = tpu.matmul %49, %72, %cst_57 {dimension_numbers = #tpu.dot_dimension_numbers<[1], [0], [0], [1], [0, 0, 1, 1], [], []>} : vector<8x72xf32>, vector<72x256xf32>, vector<8x256xf32> -> vector<8x256xf32>
    %74 = vector.broadcast %50 : vector<8x1xf32> to vector<8x256xf32>
    %75 = arith.addf %73, %74 : vector<8x256xf32>
    %cst_58 = arith.constant 0.000000e+00 : f32
    %76 = vector.broadcast %cst_58 : f32 to vector<8x256xf32>
    %77 = arith.maximumf %75, %76 : vector<8x256xf32>
    %c0_59 = arith.constant 0 : index
    %c128_60 = arith.constant 128 : index
    %78 = vector.load %arg18[%c0_59, %c128_60] : memref<8x512xf32, #tpu.memory_space<vmem>>, vector<8x256xf32>
    tpu.vector_store %arg18[%c0_59, %c128_60], %77 {strides = array<i32>} : memref<8x512xf32, #tpu.memory_space<vmem>>, vector<8x256xf32>,
    %c0_61 = arith.constant 0 : index
    %c0_62 = arith.constant 0 : index
    %79 = vector.load %arg14[%c0_61, %c0_62] : memref<8x72xf32, #tpu.memory_space<vmem>>, vector<8x72xf32>
    %c0_63 = arith.constant 0 : index
    %c0_64 = arith.constant 0 : index
    %80 = vector.load %arg15[%c0_63, %c0_64] : memref<8x1xf32, #tpu.memory_space<vmem>>, vector<8x1xf32>
    %c0_65 = arith.constant 0 : index
    %c111_66 = arith.constant 111 : index
    %81 = vector.load %arg18[%c0_65, %c111_66] : memref<8x512xf32, #tpu.memory_space<vmem>>, vector<8x256xf32>
    %82 = vector.broadcast %0 : vector<1x256xf32> to vector<8x256xf32>
    %83 = arith.mulf %81, %82 : vector<8x256xf32>
    %c0_67 = arith.constant 0 : index
    %c112_68 = arith.constant 112 : index
    %84 = vector.load %arg18[%c0_67, %c112_68] : memref<8x512xf32, #tpu.memory_space<vmem>>, vector<8x256xf32>
    %c0_69 = arith.constant 0 : index
    %c113_70 = arith.constant 113 : index
    %85 = vector.load %arg18[%c0_69, %c113_70] : memref<8x512xf32, #tpu.memory_space<vmem>>, vector<8x256xf32>
    %86 = vector.broadcast %1 : vector<1x256xf32> to vector<8x256xf32>
    %87 = arith.mulf %85, %86 : vector<8x256xf32>
    %c0_71 = arith.constant 0 : index
    %c127_72 = arith.constant 127 : index
    %88 = vector.load %arg18[%c0_71, %c127_72] : memref<8x512xf32, #tpu.memory_space<vmem>>, vector<8x256xf32>
    %89 = vector.broadcast %0 : vector<1x256xf32> to vector<8x256xf32>
    %90 = arith.mulf %88, %89 : vector<8x256xf32>
    %c0_73 = arith.constant 0 : index
    %c128_74 = arith.constant 128 : index
    %91 = vector.load %arg18[%c0_73, %c128_74] : memref<8x512xf32, #tpu.memory_space<vmem>>, vector<8x256xf32>
    %c0_75 = arith.constant 0 : index
    %c129_76 = arith.constant 129 : index
    %92 = vector.load %arg18[%c0_75, %c129_76] : memref<8x512xf32, #tpu.memory_space<vmem>>, vector<8x256xf32>
    %93 = vector.broadcast %1 : vector<1x256xf32> to vector<8x256xf32>
    %94 = arith.mulf %92, %93 : vector<8x256xf32>
    %c0_77 = arith.constant 0 : index
    %c143_78 = arith.constant 143 : index
    %95 = vector.load %arg18[%c0_77, %c143_78] : memref<8x512xf32, #tpu.memory_space<vmem>>, vector<8x256xf32>
    %96 = vector.broadcast %0 : vector<1x256xf32> to vector<8x256xf32>
    %97 = arith.mulf %95, %96 : vector<8x256xf32>
    %c0_79 = arith.constant 0 : index
    %c144_80 = arith.constant 144 : index
    %98 = vector.load %arg18[%c0_79, %c144_80] : memref<8x512xf32, #tpu.memory_space<vmem>>, vector<8x256xf32>
    %c0_81 = arith.constant 0 : index
    %c145_82 = arith.constant 145 : index
    %99 = vector.load %arg18[%c0_81, %c145_82] : memref<8x512xf32, #tpu.memory_space<vmem>>, vector<8x256xf32>
    %100 = vector.broadcast %1 : vector<1x256xf32> to vector<8x256xf32>
    %101 = arith.mulf %99, %100 : vector<8x256xf32>
    %102 = tpu.concatenate %83, %84, %87, %90, %91, %94, %97, %98, %101 in 0 : vector<8x256xf32>, vector<8x256xf32>, vector<8x256xf32>, vector<8x256xf32>, vector<8x256xf32>, vector<8x256xf32>, vector<8x256xf32>, vector<8x256xf32>, vector<8x256xf32> -> vector<72x256xf32>
    %cst_83 = arith.constant dense<0.000000e+00> : vector<8x256xf32>
    %103 = tpu.matmul %79, %102, %cst_83 {dimension_numbers = #tpu.dot_dimension_numbers<[1], [0], [0], [1], [0, 0, 1, 1], [], []>} : vector<8x72xf32>, vector<72x256xf32>, vector<8x256xf32> -> vector<8x256xf32>
    %104 = vector.broadcast %80 : vector<8x1xf32> to vector<8x256xf32>
    %105 = arith.addf %103, %104 : vector<8x256xf32>
    %cst_84 = arith.constant 0.000000e+00 : f32
    %106 = vector.broadcast %cst_84 : f32 to vector<8x256xf32>
    %107 = arith.maximumf %105, %106 : vector<8x256xf32>
    %c0_85 = arith.constant 0 : index
    %c0_86 = arith.constant 0 : index
    %108 = vector.load %arg16[%c0_85, %c0_86] : memref<8x256xf32, #tpu.memory_space<vmem>>, vector<8x256xf32>
    tpu.vector_store %arg16[%c0_85, %c0_86], %107 {strides = array<i32>} : memref<8x256xf32, #tpu.memory_space<vmem>>, vector<8x256xf32>,
    return
  }
  func.func @transform_0(%arg0: i32) -> (i32, i32) {
    %c0_i32 = arith.constant 0 : i32
    %c0_i32_0 = arith.constant 0 : i32
    %c0_i32_1 = arith.constant 0 : i32
    return %c0_i32, %c0_i32_0 : i32, i32
  }
  func.func @transform_1(%arg0: i32) -> (i32, i32) {
    %c0_i32 = arith.constant 0 : i32
    %c0_i32_0 = arith.constant 0 : i32
    %c0_i32_1 = arith.constant 0 : i32
    return %c0_i32, %c0_i32_0 : i32, i32
  }
  func.func @transform_2(%arg0: i32) -> (i32, i32) {
    %c0_i32 = arith.constant 0 : i32
    %c0_i32_0 = arith.constant 0 : i32
    %c0_i32_1 = arith.constant 0 : i32
    return %c0_i32, %c0_i32_0 : i32, i32
  }
  func.func @transform_3(%arg0: i32) -> (i32, i32) {
    %c0_i32 = arith.constant 0 : i32
    %c0_i32_0 = arith.constant 0 : i32
    %c0_i32_1 = arith.constant 0 : i32
    return %c0_i32, %c0_i32_0 : i32, i32
  }
  func.func @transform_4(%arg0: i32) -> (i32, i32) {
    %c0_i32 = arith.constant 0 : i32
    %c0_i32_0 = arith.constant 0 : i32
    %c0_i32_1 = arith.constant 0 : i32
    return %c0_i32, %c0_i32_0 : i32, i32
  }
  func.func @transform_5(%arg0: i32) -> (i32, i32) {
    %c0_i32 = arith.constant 0 : i32
    %c0_i32_0 = arith.constant 0 : i32
    %c0_i32_1 = arith.constant 0 : i32
    return %c0_i32, %c0_i32_0 : i32, i32
  }
  func.func @transform_6(%arg0: i32) -> (i32, i32) {
    %c0_i32 = arith.constant 0 : i32
    %c0_i32_0 = arith.constant 0 : i32
    %c0_i32_1 = arith.constant 0 : i32
    return %c0_i32, %c0_i32_0 : i32, i32
  }
  func.func @transform_7(%arg0: i32) -> (i32, i32) {
    %c0_i32 = arith.constant 0 : i32
    %c0_i32_0 = arith.constant 0 : i32
    %c0_i32_1 = arith.constant 0 : i32
    return %c0_i32, %c0_i32_0 : i32, i32
  }
  func.func @transform_8(%arg0: i32) -> (i32, i32) {
    %c0_i32 = arith.constant 0 : i32
    %c0_i32_0 = arith.constant 0 : i32
    %c0_i32_1 = arith.constant 0 : i32
    return %c0_i32, %c0_i32_0 : i32, i32
  }
  func.func @transform_9(%arg0: i32) -> (i32, i32) {
    %c0_i32 = arith.constant 0 : i32
    %c0_i32_0 = arith.constant 0 : i32
    %c0_i32_1 = arith.constant 0 : i32
    return %c0_i32, %c0_i32_0 : i32, i32
  }
  func.func @transform_10(%arg0: i32) -> (i32, i32) {
    %c0_i32 = arith.constant 0 : i32
    %c0_i32_0 = arith.constant 0 : i32
    %c0_i32_1 = arith.constant 0 : i32
    return %c0_i32, %c0_i32_0 : i32, i32
  }
  func.func @transform_11(%arg0: i32) -> (i32, i32) {
    %c0_i32 = arith.constant 0 : i32
    %c0_i32_0 = arith.constant 0 : i32
    %c0_i32_1 = arith.constant 0 : i32
    return %c0_i32, %c0_i32_0 : i32, i32
  }
  func.func @transform_12(%arg0: i32) -> (i32, i32) {
    %c0_i32 = arith.constant 0 : i32
    %c0_i32_0 = arith.constant 0 : i32
    %c0_i32_1 = arith.constant 0 : i32
    return %c0_i32, %c0_i32_0 : i32, i32
  }
  func.func @transform_13(%arg0: i32) -> (i32, i32) {
    %c0_i32 = arith.constant 0 : i32
    %c0_i32_0 = arith.constant 0 : i32
    %c0_i32_1 = arith.constant 0 : i32
    return %c0_i32, %c0_i32_0 : i32, i32
  }
  func.func @transform_14(%arg0: i32) -> (i32, i32) {
    %c0_i32 = arith.constant 0 : i32
    %c0_i32_0 = arith.constant 0 : i32
    %c0_i32_1 = arith.constant 0 : i32
    return %c0_i32, %c0_i32_0 : i32, i32
  }
  func.func @transform_15(%arg0: i32) -> (i32, i32) {
    %c0_i32 = arith.constant 0 : i32
    %c0_i32_0 = arith.constant 0 : i32
    %c0_i32_1 = arith.constant 0 : i32
    return %c0_i32, %c0_i32_0 : i32, i32
  }
}

</mosaic_0001>

<llo_original>
// kernel: tile.23
$region0: #{tile.23}
  #allocation0 [shape = 's32[1]{0}', space=sflag, size = 0x4, scoped, tag = 'scoped memory for tile.23']
  %s0 = inlined_call_operand.vmem [shape: f32[4], index: 0, kind: input, shape index: {}]
  %s1 = inlined_call_operand.vmem [shape: f32[2,4], index: 1, kind: output, shape index: {}]
  // Predicated region
  $region2: #{tile.23} parent=0 // pred_check
    _
  $region3: #{tile.23} parent=0 // pred_check_branch
    %3 = sbr.rel (0) target = $region5
  $region4: #{tile.23} parent=0 // pred_region
    _
  $region5: #{tile.23} parent=0 // pred_fallthru
    _
  %v4 = vld [vmem:[%s0] ss:$0 sm:$0xff]
  %5 = vst [vmem:[%s1] sm:$0x3] %v4

// kernel: tile.1
$region0: #{tile.1}
  %s0 = inlined_call_operand.vmem [shape: f32[2,4], index: 0, kind: input, shape index: {}]
  %s1 = inlined_call_operand.vmem [shape: f32[8,1], index: 1, kind: output, shape index: {}]
  $region1: #{tile.1} parent=0
    #allocation0 [shape = 'u8[4096]{0}', space=vmem, size = 0x1000, scoped, tag = 'scoped mem for input reshape']
    %s3 = sshll.u32 1, 2
    %s4 = ssub.s32 %s3, 1
    %v5 = vld [vmem:[%s0] sm:%s4]
    %6 = vst [vmem:[#allocation0] sm:%s4] %v5
    %v7 = vld [vmem:[#allocation0] sm:$0x3]
    %vm8 = vcmask 7168
    %9 = vst.msk [vmem:[%s1] ss:$4 sm:$0x3] %vm8, %v7
    %v10 = vld [vmem:[#allocation0] sm:$0x3]
    %11 = vrot.lane.b32.xlu0 %v10, 127
    %v12 = vpop.permute.xlu0 %11
    %vm13 = vcmask 7168
    %s14 = scalar_lea.vmem %s1, 1
    %15 = vst.msk [vmem:[%s14] ss:$4 sm:$0x3] %vm13, %v12
    %v16 = vld [vmem:[#allocation0] sm:$0x3]
    %17 = vrot.lane.b32.xlu0 %v16, 126
    %v18 = vpop.permute.xlu0 %17
    %vm19 = vcmask 7168
    %s20 = scalar_lea.vmem %s1, 2
    %21 = vst.msk [vmem:[%s20] ss:$4 sm:$0x3] %vm19, %v18
    %v22 = vld [vmem:[#allocation0] sm:$0x3]
    %23 = vrot.lane.b32.xlu0 %v22, 125
    %v24 = vpop.permute.xlu0 %23
    %vm25 = vcmask 7168
    %s26 = scalar_lea.vmem %s1, 3
    %27 = vst.msk [vmem:[%s26] ss:$4 sm:$0x3] %vm25, %v24

// kernel: tile.18
$region0: #{tile.18}
  #allocation0 [shape = 's32[1]{0}', space=sflag, size = 0x4, scoped, tag = 'scoped memory for tile.18']
  %s0 = inlined_call_operand.vmem [shape: f32[2], index: 0, kind: input, shape index: {}]
  %s1 = inlined_call_operand.vmem [shape: f32[2,2], index: 1, kind: output, shape index: {}]
  // Predicated region
  $region2: #{tile.18} parent=0 // pred_check
    _
  $region3: #{tile.18} parent=0 // pred_check_branch
    %3 = sbr.rel (0) target = $region5
  $region4: #{tile.18} parent=0 // pred_region
    _
  $region5: #{tile.18} parent=0 // pred_fallthru
    _
  %v4 = vld [vmem:[%s0] ss:$0 sm:$0xff]
  %5 = vst [vmem:[%s1] sm:$0x3] %v4

// kernel: tile.0
$region0: #{tile.0}
  %s0 = inlined_call_operand.vmem [shape: f32[2,2], index: 0, kind: input, shape index: {}]
  %s1 = inlined_call_operand.vmem [shape: f32[4,1], index: 1, kind: output, shape index: {}]
  $region1: #{tile.0} parent=0
    #allocation0 [shape = 'u8[4096]{0}', space=vmem, size = 0x1000, scoped, tag = 'scoped mem for output reshape']
    #allocation1 [shape = 'u8[4096]{0}', space=vmem, size = 0x1000, scoped, tag = 'scoped mem for input reshape']
    %s3 = sshll.u32 1, 2
    %s4 = ssub.s32 %s3, 1
    %v5 = vld [vmem:[%s0] sm:%s4]
    %6 = vst [vmem:[#allocation1] sm:%s4] %v5
    %v7 = vld [vmem:[#allocation1] sm:$0x3]
    %vm8 = vcmask 7168
    %9 = vst.msk [vmem:[#allocation0] ss:$2 sm:$0x3] %vm8, %v7
    %v10 = vld [vmem:[#allocation1] sm:$0x3]
    %11 = vrot.lane.b32.xlu0 %v10, 127
    %v12 = vpop.permute.xlu0 %11
    %vm13 = vcmask 7168
    %s14 = scalar_lea.vmem [#allocation0], 1
    %15 = vst.msk [vmem:[%s14] ss:$2 sm:$0x3] %vm13, %v12
    %s17 = sshll.u32 1, 4
    %s18 = ssub.s32 %s17, 1
    %v20 = vld [vmem:[#allocation0] sm:%s18]
    %s21 = sshll.u32 1, 4
    %s22 = ssub.s32 %s21, 1
    %23 = vst [vmem:[%s1] sm:%s22] %v20

// kernel: alexnet_upsampling_forward.1
$region0: #{alexnet_upsampling_forward.1}
  #allocation0 [shape = 'u32[]', space=smem, size = 0x4, offset = 0x4, fixed_abs, tag = 'smem constant byte address 0x4 - core index']
  #allocation1 [shape = 'u32[144,128]{1,0:T(1,128)}', space=vmem, size = 0x12000, scoped, tag = 'internal scratch']
  #allocation2 [shape = 'f32[8,512]{1,0:T(8,128)}', space=vmem, size = 0x4000, scoped, tag = 'scratch operand']
  #allocation3 [shape = 'f32[8,512]{1,0:T(8,128)}', space=vmem, size = 0x4000, scoped, tag = 'scratch operand']
  %s0 = inlined_call_operand.vmem [shape: f32[8,64], index: 0, kind: input, shape index: {}]
  %s1 = inlined_call_operand.vmem [shape: f32[4,256], index: 1, kind: input, shape index: {}]
  %s2 = inlined_call_operand.vmem [shape: f32[64,256], index: 2, kind: input, shape index: {}]
  %s3 = inlined_call_operand.vmem [shape: f32[32,256], index: 3, kind: input, shape index: {}]
  %s4 = inlined_call_operand.vmem [shape: f32[4,32], index: 4, kind: input, shape index: {}]
  %s5 = inlined_call_operand.vmem [shape: f32[4,1], index: 5, kind: input, shape index: {}]
  %s6 = inlined_call_operand.vmem [shape: f32[8,8], index: 6, kind: input, shape index: {}]
  %s7 = inlined_call_operand.vmem [shape: f32[8,1], index: 7, kind: input, shape index: {}]
  %s8 = inlined_call_operand.vmem [shape: f32[8,1], index: 8, kind: input, shape index: {}]
  %s9 = inlined_call_operand.vmem [shape: f32[1,256], index: 9, kind: input, shape index: {}]
  %s10 = inlined_call_operand.vmem [shape: f32[1,256], index: 10, kind: input, shape index: {}]
  %s11 = inlined_call_operand.vmem [shape: f32[8,72], index: 11, kind: input, shape index: {}]
  %s12 = inlined_call_operand.vmem [shape: f32[8,1], index: 12, kind: input, shape index: {}]
  %s13 = inlined_call_operand.vmem [shape: f32[8,72], index: 13, kind: input, shape index: {}]
  %s14 = inlined_call_operand.vmem [shape: f32[8,1], index: 14, kind: input, shape index: {}]
  %s15 = inlined_call_operand.vmem [shape: f32[8,256], index: 15, kind: output, shape index: {}]
  %s16 = sld [smem:[#allocation0]]
  $region70: #{alexnet_upsampling_forward.1} parent=0
    _
  %s18 = ssub.s32 1, %s16
  %s19 = scalar_select 0, %s18, %s16
  // Predicated region
  $region2: #{alexnet_upsampling_forward.1} parent=0 // pred_check
    _
  $region3: #{alexnet_upsampling_forward.1} parent=0 // pred_check_branch
    %21 = sbr.rel (0) target = $region5
  $region4: #{alexnet_upsampling_forward.1} parent=0 // pred_region
    _
  $region5: #{alexnet_upsampling_forward.1} parent=0 // pred_fallthru
    _
  // Predicated region
  $region6: #{alexnet_upsampling_forward.1} parent=0 // pred_check
    _
  $region7: #{alexnet_upsampling_forward.1} parent=0 // pred_check_branch
    %23 = sbr.rel (0) target = $region9
  $region8: #{alexnet_upsampling_forward.1} parent=0 // pred_region
    _
  $region9: #{alexnet_upsampling_forward.1} parent=0 // pred_fallthru
    _
  // Predicated region
  $region10: #{alexnet_upsampling_forward.1} parent=0 // pred_check
    _
  $region11: #{alexnet_upsampling_forward.1} parent=0 // pred_check_branch
    %25 = sbr.rel (0) target = $region13
  $region12: #{alexnet_upsampling_forward.1} parent=0 // pred_region
    _
  $region13: #{alexnet_upsampling_forward.1} parent=0 // pred_fallthru
    _
  // Predicated region
  $region14: #{alexnet_upsampling_forward.1} parent=0 // pred_check
    _
  $region15: #{alexnet_upsampling_forward.1} parent=0 // pred_check_branch
    %27 = sbr.rel (0) target = $region17
  $region16: #{alexnet_upsampling_forward.1} parent=0 // pred_region
    _
  $region17: #{alexnet_upsampling_forward.1} parent=0 // pred_fallthru
    _
  // Predicated region
  $region18: #{alexnet_upsampling_forward.1} parent=0 // pred_check
    _
  $region19: #{alexnet_upsampling_forward.1} parent=0 // pred_check_branch
    %29 = sbr.rel (0) target = $region21
  $region20: #{alexnet_upsampling_forward.1} parent=0 // pred_region
    _
  $region21: #{alexnet_upsampling_forward.1} parent=0 // pred_fallthru
    _
  // Predicated region
  $region22: #{alexnet_upsampling_forward.1} parent=0 // pred_check
    _
  $region23: #{alexnet_upsampling_forward.1} parent=0 // pred_check_branch
    %31 = sbr.rel (0) target = $region25
  $region24: #{alexnet_upsampling_forward.1} parent=0 // pred_region
    _
  $region25: #{alexnet_upsampling_forward.1} parent=0 // pred_fallthru
    _
  // Predicated region
  $region26: #{alexnet_upsampling_forward.1} parent=0 // pred_check
    _
  $region27: #{alexnet_upsampling_forward.1} parent=0 // pred_check_branch
    %33 = sbr.rel (0) target = $region29
  $region28: #{alexnet_upsampling_forward.1} parent=0 // pred_region
    _
  $region29: #{alexnet_upsampling_forward.1} parent=0 // pred_fallthru
    _
  // Predicated region
  $region30: #{alexnet_upsampling_forward.1} parent=0 // pred_check
    _
  $region31: #{alexnet_upsampling_forward.1} parent=0 // pred_check_branch
    %35 = sbr.rel (0) target = $region33
  $region32: #{alexnet_upsampling_forward.1} parent=0 // pred_region
    _
  $region33: #{alexnet_upsampling_forward.1} parent=0 // pred_fallthru
    _
  // Predicated region
  $region34: #{alexnet_upsampling_forward.1} parent=0 // pred_check
    _
  $region35: #{alexnet_upsampling_forward.1} parent=0 // pred_check_branch
    %37 = sbr.rel (0) target = $region37
  $region36: #{alexnet_upsampling_forward.1} parent=0 // pred_region
    _
  $region37: #{alexnet_upsampling_forward.1} parent=0 // pred_fallthru
    _
  // Predicated region
  $region38: #{alexnet_upsampling_forward.1} parent=0 // pred_check
    _
  $region39: #{alexnet_upsampling_forward.1} parent=0 // pred_check_branch
    %39 = sbr.rel (0) target = $region41
  $region40: #{alexnet_upsampling_forward.1} parent=0 // pred_region
    _
  $region41: #{alexnet_upsampling_forward.1} parent=0 // pred_fallthru
    _
  // Predicated region
  $region42: #{alexnet_upsampling_forward.1} parent=0 // pred_check
    _
  $region43: #{alexnet_upsampling_forward.1} parent=0 // pred_check_branch
    %41 = sbr.rel (0) target = $region45
  $region44: #{alexnet_upsampling_forward.1} parent=0 // pred_region
    _
  $region45: #{alexnet_upsampling_forward.1} parent=0 // pred_fallthru
    _
  // Predicated region
  $region46: #{alexnet_upsampling_forward.1} parent=0 // pred_check
    _
  $region47: #{alexnet_upsampling_forward.1} parent=0 // pred_check_branch
    %43 = sbr.rel (0) target = $region49
  $region48: #{alexnet_upsampling_forward.1} parent=0 // pred_region
    _
  $region49: #{alexnet_upsampling_forward.1} parent=0 // pred_fallthru
    _
  // Predicated region
  $region50: #{alexnet_upsampling_forward.1} parent=0 // pred_check
    _
  $region51: #{alexnet_upsampling_forward.1} parent=0 // pred_check_branch
    %45 = sbr.rel (0) target = $region53
  $region52: #{alexnet_upsampling_forward.1} parent=0 // pred_region
    _
  $region53: #{alexnet_upsampling_forward.1} parent=0 // pred_fallthru
    _
  // Predicated region
  $region54: #{alexnet_upsampling_forward.1} parent=0 // pred_check
    _
  $region55: #{alexnet_upsampling_forward.1} parent=0 // pred_check_branch
    %47 = sbr.rel (0) target = $region57
  $region56: #{alexnet_upsampling_forward.1} parent=0 // pred_region
    _
  $region57: #{alexnet_upsampling_forward.1} parent=0 // pred_fallthru
    _
  // Predicated region
  $region58: #{alexnet_upsampling_forward.1} parent=0 // pred_check
    _
  $region59: #{alexnet_upsampling_forward.1} parent=0 // pred_check_branch
    %49 = sbr.rel (0) target = $region61
  $region60: #{alexnet_upsampling_forward.1} parent=0 // pred_region
    _
  $region61: #{alexnet_upsampling_forward.1} parent=0 // pred_fallthru
    _
  %v50 = vld [vmem:[%s9] sm:$0x3]
  %v51 = vld [vmem:[%s10] sm:$0x3]
  %52 = vst [vmem:[#allocation2] sm:$0xff] 0.0
  %53 = vst [vmem:[#allocation2 + $0x18] sm:$0xff] 0.0
  %54 = vst [vmem:[#allocation3] sm:$0xff] 0.0
  %55 = vst [vmem:[#allocation3 + $0x18] sm:$0xff] 0.0
  %v56 = vld [vmem:[%s0] sm:$0xff]
  %v57 = vld [vmem:[%s2] sm:$0xff]
  %v58 = vld [vmem:[%s2 + $0x8] sm:$0xff]
  %v59 = vld [vmem:[%s2 + $0x10] sm:$0xff]
  %v60 = vld [vmem:[%s2 + $0x18] sm:$0xff]
  %v61 = vld [vmem:[%s2 + $0x20] sm:$0xff]
  %v62 = vld [vmem:[%s2 + $0x28] sm:$0xff]
  %v63 = vld [vmem:[%s2 + $0x30] sm:$0xff]
  %v64 = vld [vmem:[%s2 + $0x38] sm:$0xff]
  %v65 = vld [vmem:[%s2 + $0x40] sm:$0xff]
  %v66 = vld [vmem:[%s2 + $0x48] sm:$0xff]
  %v67 = vld [vmem:[%s2 + $0x50] sm:$0xff]
  %v68 = vld [vmem:[%s2 + $0x58] sm:$0xff]
  %v69 = vld [vmem:[%s2 + $0x60] sm:$0xff]
  %v70 = vld [vmem:[%s2 + $0x68] sm:$0xff]
  %v71 = vld [vmem:[%s2 + $0x70] sm:$0xff]
  %v72 = vld [vmem:[%s2 + $0x78] sm:$0xff]
  %vm73 = vcmask 523264
  %v75 = vsel %vm73, %v56, 0
  %77 = vmatprep.subr.mxu0 0.0
  %78 = vmatpush1.msra.mxu0 0.0
  %79 = vmatprep.subr.mxu0 0.0
  %80 = vmatpush1.msra.mxu0 0.0
  %81 = vmatprep.subr.mxu0 0.0
  %82 = vmatpush1.msra.mxu0 0.0
  %83 = vmatprep.subr.mxu0 0.0
  %84 = vmatpush1.msra.mxu0 0.0
  %85 = vmatprep.subr.mxu0 0.0
  %86 = vmatpush1.msra.mxu0 0.0
  %87 = vmatprep.subr.mxu0 0.0
  %88 = vmatpush1.msra.mxu0 0.0
  %89 = vmatprep.subr.mxu0 0.0
  %90 = vmatpush1.msra.mxu0 0.0
  %91 = vmatprep.subr.mxu0 0.0
  %92 = vmatpush1.msra.mxu0 0.0
  %93 = vmatprep.subr.mxu0 %v72
  %94 = vmatpush1.msra.mxu0 %v71
  %95 = vmatprep.subr.mxu0 %v70
  %96 = vmatpush1.msra.mxu0 %v69
  %97 = vmatprep.subr.mxu0 %v68
  %98 = vmatpush1.msra.mxu0 %v67
  %99 = vmatprep.subr.mxu0 %v66
  %100 = vmatpush1.msra.mxu0 %v65
  %101 = vmatprep.subr.mxu0 %v64
  %102 = vmatpush1.msra.mxu0 %v63
  %103 = vmatprep.subr.mxu0 %v62
  %104 = vmatpush1.msra.mxu0 %v61
  %105 = vmatprep.subr.mxu0 %v60
  %106 = vmatpush1.msra.mxu0 %v59
  %107 = vmatprep.subr.mxu0 %v58
  %108 = vmatpush1.msra.mxu0 %v57
  %109 = vmatprep.subr.mxu0 0.0
  %110 = vmatpush2.msra.mxu0 0.0
  %111 = vmatprep.subr.mxu0 0.0
  %112 = vmatpush2.msra.mxu0 0.0
  %113 = vmatprep.subr.mxu0 0.0
  %114 = vmatpush2.msra.mxu0 0.0
  %115 = vmatprep.subr.mxu0 0.0
  %116 = vmatpush2.msra.mxu0 0.0
  %117 = vmatprep.subr.mxu0 0.0
  %118 = vmatpush2.msra.mxu0 0.0
  %119 = vmatprep.subr.mxu0 0.0
  %120 = vmatpush2.msra.mxu0 0.0
  %121 = vmatprep.subr.mxu0 0.0
  %122 = vmatpush2.msra.mxu0 0.0
  %123 = vmatprep.subr.mxu0 0.0
  %124 = vmatpush2.msra.mxu0 0.0
  %125 = vmatprep.subr.mxu0 0.0
  %126 = vmatpush2.msra.mxu0 0.0
  %127 = vmatprep.subr.mxu0 0.0
  %128 = vmatpush2.msra.mxu0 0.0
  %129 = vmatprep.subr.mxu0 0.0
  %130 = vmatpush2.msra.mxu0 0.0
  %131 = vmatprep.subr.mxu0 0.0
  %132 = vmatpush2.msra.mxu0 0.0
  %133 = vmatprep.subr.mxu0 0.0
  %134 = vmatpush2.msra.mxu0 0.0
  %135 = vmatprep.subr.mxu0 0.0
  %136 = vmatpush2.msra.mxu0 0.0
  %137 = vmatprep.subr.mxu0 0.0
  %138 = vmatpush2.msra.mxu0 0.0
  %139 = vmatprep.subr.mxu0 0.0
  %140 = vmatpush2.msra.mxu0 0.0
  %141 = vmatprep.mubr.f32.mxu0 0.0
  %142 = vmatmul.mubr.f32.gmra.mxu0 %v75
  %v143 = vpop.f32.mrf.mxu0
  %v144 = vadd.f32 0.0, %v143
  %v145 = vpop.f32.mrf.mxu0
  %v146 = vadd.f32 0.0, %v145
  %147 = vdwg.mxu0
  %v148 = vld [vmem:[%s3] sm:$0xff]
  %v149 = vld [vmem:[%s3 + $0x8] sm:$0xff]
  %v150 = vld [vmem:[%s3 + $0x10] sm:$0xff]
  %v151 = vld [vmem:[%s3 + $0x18] sm:$0xff]
  %v152 = vld [vmem:[%s3 + $0x20] sm:$0xff]
  %v153 = vld [vmem:[%s3 + $0x28] sm:$0xff]
  %v154 = vld [vmem:[%s3 + $0x30] sm:$0xff]
  %v155 = vld [vmem:[%s3 + $0x38] sm:$0xff]
  %v156 = vmul.f32 %v144, %v148
  %v157 = vmul.f32 %v146, %v149
  %v158 = vmul.f32 %v144, %v150
  %v159 = vmul.f32 %v146, %v151
  %v160 = vmul.f32 %v144, %v152
  %v161 = vmul.f32 %v146, %v153
  %v162 = vmul.f32 %v144, %v154
  %v163 = vmul.f32 %v146, %v155
  %v164 = vld [vmem:[%s4] sm:$0xf]
  %v165 = vld [vmem:[%s5] sm:$0xf]
  %167 = vset.pattern.permute.xlu0 0
  %168 = vperm.xlu0 %167, %v165
  %v169 = vpop.permute.xlu0 %168
  %vm171 = vcmask 261120
  %v173 = vsel %vm171, %v164, 0
  %175 = vmatprep.subr.mxu0 0.0
  %176 = vmatpush1.msra.mxu0 0.0
  %177 = vmatprep.subr.mxu0 0.0
  %178 = vmatpush1.msra.mxu0 0.0
  %179 = vmatprep.subr.mxu0 0.0
  %180 = vmatpush1.msra.mxu0 0.0
  %181 = vmatprep.subr.mxu0 0.0
  %182 = vmatpush1.msra.mxu0 0.0
  %183 = vmatprep.subr.mxu0 0.0
  %184 = vmatpush1.msra.mxu0 0.0
  %185 = vmatprep.subr.mxu0 0.0
  %186 = vmatpush1.msra.mxu0 0.0
  %187 = vmatprep.subr.mxu0 0.0
  %188 = vmatpush1.msra.mxu0 0.0
  %189 = vmatprep.subr.mxu0 0.0
  %190 = vmatpush1.msra.mxu0 0.0
  %191 = vmatprep.subr.mxu0 0.0
  %192 = vmatpush1.msra.mxu0 0.0
  %193 = vmatprep.subr.mxu0 0.0
  %194 = vmatpush1.msra.mxu0 0.0
  %195 = vmatprep.subr.mxu0 0.0
  %196 = vmatpush1.msra.mxu0 0.0
  %197 = vmatprep.subr.mxu0 0.0
  %198 = vmatpush1.msra.mxu0 0.0
  %199 = vmatprep.subr.mxu0 %v163
  %200 = vmatpush1.msra.mxu0 %v162
  %201 = vmatprep.subr.mxu0 %v161
  %202 = vmatpush1.msra.mxu0 %v160
  %203 = vmatprep.subr.mxu0 %v159
  %204 = vmatpush1.msra.mxu0 %v158
  %205 = vmatprep.subr.mxu0 %v157
  %206 = vmatpush1.msra.mxu0 %v156
  %207 = vmatprep.subr.mxu0 0.0
  %208 = vmatpush2.msra.mxu0 0.0
  %209 = vmatprep.subr.mxu0 0.0
  %210 = vmatpush2.msra.mxu0 0.0
  %211 = vmatprep.subr.mxu0 0.0
  %212 = vmatpush2.msra.mxu0 0.0
  %213 = vmatprep.subr.mxu0 0.0
  %214 = vmatpush2.msra.mxu0 0.0
  %215 = vmatprep.subr.mxu0 0.0
  %216 = vmatpush2.msra.mxu0 0.0
  %217 = vmatprep.subr.mxu0 0.0
  %218 = vmatpush2.msra.mxu0 0.0
  %219 = vmatprep.subr.mxu0 0.0
  %220 = vmatpush2.msra.mxu0 0.0
  %221 = vmatprep.subr.mxu0 0.0
  %222 = vmatpush2.msra.mxu0 0.0
  %223 = vmatprep.subr.mxu0 0.0
  %224 = vmatpush2.msra.mxu0 0.0
  %225 = vmatprep.subr.mxu0 0.0
  %226 = vmatpush2.msra.mxu0 0.0
  %227 = vmatprep.subr.mxu0 0.0
  %228 = vmatpush2.msra.mxu0 0.0
  %229 = vmatprep.subr.mxu0 0.0
  %230 = vmatpush2.msra.mxu0 0.0
  %231 = vmatprep.subr.mxu0 0.0
  %232 = vmatpush2.msra.mxu0 0.0
  %233 = vmatprep.subr.mxu0 0.0
  %234 = vmatpush2.msra.mxu0 0.0
  %235 = vmatprep.subr.mxu0 0.0
  %236 = vmatpush2.msra.mxu0 0.0
  %237 = vmatprep.subr.mxu0 0.0
  %238 = vmatpush2.msra.mxu0 0.0
  %239 = vmatprep.mubr.f32.mxu0 0.0
  %240 = vmatmul.mubr.f32.gmra.mxu0 %v173
  %v241 = vpop.f32.mrf.mxu0
  %v242 = vadd.f32 %v169, %v241
  %v243 = vpop.f32.mrf.mxu0
  %v244 = vadd.f32 %v169, %v243
  %245 = vdwg.mxu0
  %v246 = vld [vmem:[%s1] sm:$0xff]
  %v248 = vcombine.high %v246, %v246
  %v252 = vrot.slane %v242, 4
  %v253 = vrot.slane %v244, 4
  %vm256 = vcmask 1043456
  %v257 = vsel %vm256, %v246, %v252
  %v258 = vsel %vm256, %v248, %v253
  %v259 = vadd.f32 %v257, %v258
  %260 = vadd.xlane.f32.xlu0 %v259
  %v261 = vpop.xlane.xlu0 %260
  %v262 = vld [vmem:[%s6] sm:$0xff]
  %vm263 = vcmask 64512
  %v265 = vsel %vm263, %v262, 0
  %267 = vmatprep.subr.mxu0 0.0
  %268 = vmatpush1.msra.mxu0 0.0
  %269 = vmatprep.subr.mxu0 0.0
  %270 = vmatpush1.msra.mxu0 0.0
  %271 = vmatprep.subr.mxu0 0.0
  %272 = vmatpush1.msra.mxu0 0.0
  %273 = vmatprep.subr.mxu0 0.0
  %274 = vmatpush1.msra.mxu0 0.0
  %275 = vmatprep.subr.mxu0 0.0
  %276 = vmatpush1.msra.mxu0 0.0
  %277 = vmatprep.subr.mxu0 0.0
  %278 = vmatpush1.msra.mxu0 0.0
  %279 = vmatprep.subr.mxu0 0.0
  %280 = vmatpush1.msra.mxu0 0.0
  %281 = vmatprep.subr.mxu0 0.0
  %282 = vmatpush1.msra.mxu0 0.0
  %283 = vmatprep.subr.mxu0 0.0
  %284 = vmatpush1.msra.mxu0 0.0
  %285 = vmatprep.subr.mxu0 0.0
  %286 = vmatpush1.msra.mxu0 0.0
  %287 = vmatprep.subr.mxu0 0.0
  %288 = vmatpush1.msra.mxu0 0.0
  %289 = vmatprep.subr.mxu0 0.0
  %290 = vmatpush1.msra.mxu0 0.0
  %291 = vmatprep.subr.mxu0 0.0
  %292 = vmatpush1.msra.mxu0 0.0
  %293 = vmatprep.subr.mxu0 0.0
  %294 = vmatpush1.msra.mxu0 0.0
  %295 = vmatprep.subr.mxu0 0.0
  %296 = vmatpush1.msra.mxu0 0.0
  %297 = vmatprep.subr.mxu0 0.0
  %298 = vmatpush1.msra.mxu0 %v261
  %299 = vmatprep.subr.mxu0 0.0
  %300 = vmatpush2.msra.mxu0 0.0
  %301 = vmatprep.subr.mxu0 0.0
  %302 = vmatpush2.msra.mxu0 0.0
  %303 = vmatprep.subr.mxu0 0.0
  %304 = vmatpush2.msra.mxu0 0.0
  %305 = vmatprep.subr.mxu0 0.0
  %306 = vmatpush2.msra.mxu0 0.0
  %307 = vmatprep.subr.mxu0 0.0
  %308 = vmatpush2.msra.mxu0 0.0
  %309 = vmatprep.subr.mxu0 0.0
  %310 = vmatpush2.msra.mxu0 0.0
  %311 = vmatprep.subr.mxu0 0.0
  %312 = vmatpush2.msra.mxu0 0.0
  %313 = vmatprep.subr.mxu0 0.0
  %314 = vmatpush2.msra.mxu0 0.0
  %315 = vmatprep.subr.mxu0 0.0
  %316 = vmatpush2.msra.mxu0 0.0
  %317 = vmatprep.subr.mxu0 0.0
  %318 = vmatpush2.msra.mxu0 0.0
  %319 = vmatprep.subr.mxu0 0.0
  %320 = vmatpush2.msra.mxu0 0.0
  %321 = vmatprep.subr.mxu0 0.0
  %322 = vmatpush2.msra.mxu0 0.0
  %323 = vmatprep.subr.mxu0 0.0
  %324 = vmatpush2.msra.mxu0 0.0
  %325 = vmatprep.subr.mxu0 0.0
  %326 = vmatpush2.msra.mxu0 0.0
  %327 = vmatprep.subr.mxu0 0.0
  %328 = vmatpush2.msra.mxu0 0.0
  %329 = vmatprep.subr.mxu0 0.0
  %330 = vmatpush2.msra.mxu0 0.0
  %331 = vmatprep.mubr.f32.mxu0 0.0
  %332 = vmatmul.mubr.f32.gmra.mxu0 %v265
  %v333 = vpop.f32.mrf.mxu0
  %v334 = vadd.f32 0.0, %v333
  %v335 = vpop.f32.mrf.mxu0
  %336 = vdwg.mxu0
  %v337 = vmul.f32 %v334, 0.001953125
  %339 = vset.pattern.permute.xlu0 0
  %340 = vperm.xlu0 %339, %v337
  %v341 = vpop.permute.xlu0 %340
  %v343 = vsub.f32 %v257, %v341
  %v344 = vsub.f32 %v258, %v341
  %v345 = vmul.f32 %v343, %v343
  %v346 = vmul.f32 %v344, %v344
  %v347 = vadd.f32 %v345, %v346
  %348 = vadd.xlane.f32.xlu0 %v347
  %v349 = vpop.xlane.xlu0 %348
  %350 = vmatprep.subr.mxu0 0.0
  %351 = vmatpush1.msra.mxu0 0.0
  %352 = vmatprep.subr.mxu0 0.0
  %353 = vmatpush1.msra.mxu0 0.0
  %354 = vmatprep.subr.mxu0 0.0
  %355 = vmatpush1.msra.mxu0 0.0
  %356 = vmatprep.subr.mxu0 0.0
  %357 = vmatpush1.msra.mxu0 0.0
  %358 = vmatprep.subr.mxu0 0.0
  %359 = vmatpush1.msra.mxu0 0.0
  %360 = vmatprep.subr.mxu0 0.0
  %361 = vmatpush1.msra.mxu0 0.0
  %362 = vmatprep.subr.mxu0 0.0
  %363 = vmatpush1.msra.mxu0 0.0
  %364 = vmatprep.subr.mxu0 0.0
  %365 = vmatpush1.msra.mxu0 0.0
  %366 = vmatprep.subr.mxu0 0.0
  %367 = vmatpush1.msra.mxu0 0.0
  %368 = vmatprep.subr.mxu0 0.0
  %369 = vmatpush1.msra.mxu0 0.0
  %370 = vmatprep.subr.mxu0 0.0
  %371 = vmatpush1.msra.mxu0 0.0
  %372 = vmatprep.subr.mxu0 0.0
  %373 = vmatpush1.msra.mxu0 0.0
  %374 = vmatprep.subr.mxu0 0.0
  %375 = vmatpush1.msra.mxu0 0.0
  %376 = vmatprep.subr.mxu0 0.0
  %377 = vmatpush1.msra.mxu0 0.0
  %378 = vmatprep.subr.mxu0 0.0
  %379 = vmatpush1.msra.mxu0 0.0
  %380 = vmatprep.subr.mxu0 0.0
  %381 = vmatpush1.msra.mxu0 %v349
  %382 = vmatprep.subr.mxu0 0.0
  %383 = vmatpush2.msra.mxu0 0.0
  %384 = vmatprep.subr.mxu0 0.0
  %385 = vmatpush2.msra.mxu0 0.0
  %386 = vmatprep.subr.mxu0 0.0
  %387 = vmatpush2.msra.mxu0 0.0
  %388 = vmatprep.subr.mxu0 0.0
  %389 = vmatpush2.msra.mxu0 0.0
  %390 = vmatprep.subr.mxu0 0.0
  %391 = vmatpush2.msra.mxu0 0.0
  %392 = vmatprep.subr.mxu0 0.0
  %393 = vmatpush2.msra.mxu0 0.0
  %394 = vmatprep.subr.mxu0 0.0
  %395 = vmatpush2.msra.mxu0 0.0
  %396 = vmatprep.subr.mxu0 0.0
  %397 = vmatpush2.msra.mxu0 0.0
  %398 = vmatprep.subr.mxu0 0.0
  %399 = vmatpush2.msra.mxu0 0.0
  %400 = vmatprep.subr.mxu0 0.0
  %401 = vmatpush2.msra.mxu0 0.0
  %402 = vmatprep.subr.mxu0 0.0
  %403 = vmatpush2.msra.mxu0 0.0
  %404 = vmatprep.subr.mxu0 0.0
  %405 = vmatpush2.msra.mxu0 0.0
  %406 = vmatprep.subr.mxu0 0.0
  %407 = vmatpush2.msra.mxu0 0.0
  %408 = vmatprep.subr.mxu0 0.0
  %409 = vmatpush2.msra.mxu0 0.0
  %410 = vmatprep.subr.mxu0 0.0
  %411 = vmatpush2.msra.mxu0 0.0
  %412 = vmatprep.subr.mxu0 0.0
  %413 = vmatpush2.msra.mxu0 0.0
  %414 = vmatprep.mubr.f32.mxu0 0.0
  %415 = vmatmul.mubr.f32.gmra.mxu0 %v265
  %v416 = vpop.f32.mrf.mxu0
  %v417 = vadd.f32 0.0, %v416
  %v418 = vpop.f32.mrf.mxu0
  %419 = vdwg.mxu0
  %v420 = vmul.f32 %v417, 0.001953125
  %v421 = vadd.f32 %v420, 1e-05
  %v422 = vrsqrt.pop %v421
  %v423 = vld [vmem:[%s7] sm:$0xff]
  %v424 = vmul.f32 %v422, %v423
  %426 = vset.pattern.permute.xlu0 0
  %427 = vperm.xlu0 %426, %v424
  %v428 = vpop.permute.xlu0 %427
  %v430 = vmul.f32 %v343, %v428
  %v431 = vmul.f32 %v344, %v428
  %v432 = vld [vmem:[%s8] sm:$0xff]
  %434 = vset.pattern.permute.xlu0 0
  %435 = vperm.xlu0 %434, %v432
  %v436 = vpop.permute.xlu0 %435
  %v438 = vadd.f32 %v430, %v436
  %v439 = vadd.f32 %v431, %v436
  %440 = vst [vmem:[#allocation2 + $0x8] sm:$0xff] %v438
  %441 = vst [vmem:[#allocation2 + $0x10] sm:$0xff] %v439
  %v442 = vld [vmem:[%s11] sm:$0xff]
  %v443 = vld [vmem:[%s12] sm:$0xff]
  %v444 = vld [vmem:[#allocation2] sm:$0xff]
  %v445 = vld [vmem:[#allocation2 + $0x8] sm:$0xff]
  %v446 = vld [vmem:[#allocation2 + $0x10] sm:$0xff]
  %v448 = vlaneseq
  %v449 = vshrl.u32 %v448, 7
  %v450 = vsub.s32 0, %v449
  %v451 = vrot.slane %v50, %v450
  %v452 = vlaneseq
  %v453 = vshrl.u32 %v452, 7
  %v454 = vsub.s32 1, %v453
  %v455 = vrot.slane %v50, %v454
  %456 = vrot.lane.b32.xlu0 %v451, 111
  %v457 = vpop.permute.xlu0 %456
  %458 = vrot.lane.b32.xlu0 %v455, 111
  %v459 = vpop.permute.xlu0 %458
  %vm460 = vcmask 908288
  %v461 = vsel %vm460, %v457, %v459
  %v465 = vmul.f32 %v444, %v457
  %v466 = vmul.f32 %v445, %v461
  %v467 = vmul.f32 %v446, %v459
  %v469 = vlaneseq
  %v470 = vshrl.u32 %v469, 7
  %v471 = vsub.s32 0, %v470
  %v472 = vrot.slane %v51, %v471
  %v473 = vlaneseq
  %v474 = vshrl.u32 %v473, 7
  %v475 = vsub.s32 1, %v474
  %v476 = vrot.slane %v51, %v475
  %477 = vrot.lane.b32.xlu0 %v472, 113
  %v478 = vpop.permute.xlu0 %477
  %479 = vrot.lane.b32.xlu0 %v476, 113
  %v480 = vpop.permute.xlu0 %479
  %vm481 = vcmask 924672
  %v482 = vsel %vm481, %v478, %v480
  %v486 = vmul.f32 %v444, %v478
  %v487 = vmul.f32 %v445, %v482
  %v488 = vmul.f32 %v446, %v480
  %489 = vrot.lane.b32.xlu0 %v451, 127
  %v490 = vpop.permute.xlu0 %489
  %491 = vrot.lane.b32.xlu0 %v455, 127
  %v492 = vpop.permute.xlu0 %491
  %vm493 = vcmask 1039360
  %v494 = vsel %vm493, %v490, %v492
  %v498 = vmul.f32 %v444, %v490
  %v499 = vmul.f32 %v445, %v494
  %v500 = vmul.f32 %v446, %v492
  %v501 = vld [vmem:[#allocation2 + $0x8] sm:$0xff]
  %v502 = vld [vmem:[#allocation2 + $0x10] sm:$0xff]
  %v503 = vld [vmem:[#allocation2 + $0x18] sm:$0xff]
  %504 = vrot.lane.b32.xlu0 %v472, 1
  %v505 = vpop.permute.xlu0 %504
  %506 = vrot.lane.b32.xlu0 %v476, 1
  %v507 = vpop.permute.xlu0 %506
  %vm508 = vcmask 7168
  %v509 = vsel %vm508, %v505, %v507
  %v513 = vmul.f32 %v501, %v505
  %v514 = vmul.f32 %v502, %v509
  %v515 = vmul.f32 %v503, %v507
  %516 = vrot.lane.b32.xlu0 %v451, 15
  %v517 = vpop.permute.xlu0 %516
  %518 = vrot.lane.b32.xlu0 %v455, 15
  %v519 = vpop.permute.xlu0 %518
  %vm520 = vcmask 121856
  %v521 = vsel %vm520, %v517, %v519
  %v525 = vmul.f32 %v501, %v517
  %v526 = vmul.f32 %v502, %v521
  %v527 = vmul.f32 %v503, %v519
  %528 = vrot.lane.b32.xlu0 %v472, 17
  %v529 = vpop.permute.xlu0 %528
  %530 = vrot.lane.b32.xlu0 %v476, 17
  %v531 = vpop.permute.xlu0 %530
  %vm532 = vcmask 138240
  %v533 = vsel %vm532, %v529, %v531
  %v537 = vmul.f32 %v501, %v529
  %v538 = vmul.f32 %v502, %v533
  %v539 = vmul.f32 %v503, %v531
  %543 = vrot.lane.b32.xlu0 %v444, 127
  %v544 = vpop.permute.xlu0 %543
  %545 = vrot.lane.b32.xlu0 %v445, 127
  %v546 = vpop.permute.xlu0 %545
  %547 = vrot.lane.b32.xlu0 %v446, 127
  %v548 = vpop.permute.xlu0 %547
  %v549 = vsel %vm493, %v544, %v546
  %v550 = vsel %vm493, %v546, %v548
  %554 = vrot.lane.b32.xlu0 %v486, 126
  %v555 = vpop.permute.xlu0 %554
  %556 = vrot.lane.b32.xlu0 %v487, 126
  %v557 = vpop.permute.xlu0 %556
  %558 = vrot.lane.b32.xlu0 %v488, 126
  %v559 = vpop.permute.xlu0 %558
  %vm560 = vcmask 1031168
  %v561 = vsel %vm560, %v555, %v557
  %v562 = vsel %vm560, %v557, %v559
  %566 = vrot.lane.b32.xlu0 %v498, 112
  %v567 = vpop.permute.xlu0 %566
  %568 = vrot.lane.b32.xlu0 %v499, 112
  %v569 = vpop.permute.xlu0 %568
  %570 = vrot.lane.b32.xlu0 %v500, 112
  %v571 = vpop.permute.xlu0 %570
  %vm572 = vcmask 916480
  %v573 = vsel %vm572, %v567, %v569
  %v574 = vsel %vm572, %v569, %v571
  %575 = vrot.lane.b32.xlu0 %v445, 111
  %v576 = vpop.permute.xlu0 %575
  %577 = vrot.lane.b32.xlu0 %v446, 111
  %v578 = vpop.permute.xlu0 %577
  %v579 = vsel %vm460, %v576, %v578
  %583 = vrot.lane.b32.xlu0 %v513, 110
  %v584 = vpop.permute.xlu0 %583
  %585 = vrot.lane.b32.xlu0 %v514, 110
  %v586 = vpop.permute.xlu0 %585
  %587 = vrot.lane.b32.xlu0 %v515, 110
  %v588 = vpop.permute.xlu0 %587
  %vm589 = vcmask 900096
  %v590 = vsel %vm589, %v584, %v586
  %v591 = vsel %vm589, %v586, %v588
  %595 = vrot.lane.b32.xlu0 %v525, 96
  %v596 = vpop.permute.xlu0 %595
  %597 = vrot.lane.b32.xlu0 %v526, 96
  %v598 = vpop.permute.xlu0 %597
  %599 = vrot.lane.b32.xlu0 %v527, 96
  %v600 = vpop.permute.xlu0 %599
  %vm601 = vcmask 785408
  %v602 = vsel %vm601, %v596, %v598
  %v603 = vsel %vm601, %v598, %v600
  %607 = vrot.lane.b32.xlu0 %v501, 95
  %v608 = vpop.permute.xlu0 %607
  %609 = vrot.lane.b32.xlu0 %v502, 95
  %v610 = vpop.permute.xlu0 %609
  %611 = vrot.lane.b32.xlu0 %v503, 95
  %v612 = vpop.permute.xlu0 %611
  %vm613 = vcmask 777216
  %v614 = vsel %vm613, %v608, %v610
  %v615 = vsel %vm613, %v610, %v612
  %619 = vrot.lane.b32.xlu0 %v537, 94
  %v620 = vpop.permute.xlu0 %619
  %621 = vrot.lane.b32.xlu0 %v538, 94
  %v622 = vpop.permute.xlu0 %621
  %623 = vrot.lane.b32.xlu0 %v539, 94
  %v624 = vpop.permute.xlu0 %623
  %vm625 = vcmask 769024
  %v626 = vsel %vm625, %v620, %v622
  %v627 = vsel %vm625, %v622, %v624
  %629 = vset.pattern.permute.xlu0 0
  %630 = vperm.xlu0 %629, %v443
  %v631 = vpop.permute.xlu0 %630
  %636 = vrot.lane.b32.xlu0 %v465, 17
  %v637 = vpop.permute.xlu0 %636
  %638 = vrot.lane.b32.xlu0 %v466, 17
  %v639 = vpop.permute.xlu0 %638
  %640 = vrot.lane.b32.xlu0 %v467, 17
  %v641 = vpop.permute.xlu0 %640
  %642 = vrot.lane.b32.xlu0 %v549, 17
  %v643 = vpop.permute.xlu0 %642
  %644 = vrot.lane.b32.xlu0 %v550, 17
  %v645 = vpop.permute.xlu0 %644
  %646 = vrot.lane.b32.xlu0 %v548, 17
  %v647 = vpop.permute.xlu0 %646
  %648 = vrot.lane.b32.xlu0 %v561, 17
  %v649 = vpop.permute.xlu0 %648
  %650 = vrot.lane.b32.xlu0 %v562, 17
  %v651 = vpop.permute.xlu0 %650
  %652 = vrot.lane.b32.xlu0 %v559, 17
  %v653 = vpop.permute.xlu0 %652
  %654 = vrot.lane.b32.xlu0 %v573, 17
  %v655 = vpop.permute.xlu0 %654
  %656 = vrot.lane.b32.xlu0 %v574, 17
  %v657 = vpop.permute.xlu0 %656
  %658 = vrot.lane.b32.xlu0 %v571, 17
  %v659 = vpop.permute.xlu0 %658
  %660 = vrot.lane.b32.xlu0 %v576, 17
  %v661 = vpop.permute.xlu0 %660
  %662 = vrot.lane.b32.xlu0 %v579, 17
  %v663 = vpop.permute.xlu0 %662
  %664 = vrot.lane.b32.xlu0 %v578, 17
  %v665 = vpop.permute.xlu0 %664
  %666 = vrot.lane.b32.xlu0 %v584, 17
  %v667 = vpop.permute.xlu0 %666
  %668 = vrot.lane.b32.xlu0 %v590, 17
  %v669 = vpop.permute.xlu0 %668
  %670 = vrot.lane.b32.xlu0 %v591, 17
  %v671 = vpop.permute.xlu0 %670
  %672 = vrot.lane.b32.xlu0 %v596, 17
  %v673 = vpop.permute.xlu0 %672
  %674 = vrot.lane.b32.xlu0 %v602, 17
  %v675 = vpop.permute.xlu0 %674
  %676 = vrot.lane.b32.xlu0 %v603, 17
  %v677 = vpop.permute.xlu0 %676
  %678 = vrot.lane.b32.xlu0 %v608, 17
  %v679 = vpop.permute.xlu0 %678
  %680 = vrot.lane.b32.xlu0 %v614, 17
  %v681 = vpop.permute.xlu0 %680
  %682 = vrot.lane.b32.xlu0 %v615, 17
  %v683 = vpop.permute.xlu0 %682
  %684 = vrot.lane.b32.xlu0 %v620, 17
  %v685 = vpop.permute.xlu0 %684
  %686 = vrot.lane.b32.xlu0 %v626, 17
  %v687 = vpop.permute.xlu0 %686
  %688 = vrot.lane.b32.xlu0 %v627, 17
  %v689 = vpop.permute.xlu0 %688
  %v690 = vsel %vm532, %v637, %v639
  %v691 = vsel %vm532, %v639, %v641
  %v692 = vsel %vm532, %v643, %v645
  %v693 = vsel %vm532, %v645, %v647
  %v694 = vsel %vm532, %v649, %v651
  %v695 = vsel %vm532, %v651, %v653
  %v696 = vsel %vm532, %v655, %v657
  %v697 = vsel %vm532, %v657, %v659
  %v698 = vsel %vm532, %v661, %v663
  %v699 = vsel %vm532, %v663, %v665
  %v700 = vsel %vm532, %v667, %v669
  %v701 = vsel %vm532, %v669, %v671
  %v702 = vsel %vm532, %v673, %v675
  %v703 = vsel %vm532, %v675, %v677
  %v704 = vsel %vm532, %v679, %v681
  %v705 = vsel %vm532, %v681, %v683
  %v706 = vsel %vm532, %v685, %v687
  %v707 = vsel %vm532, %v687, %v689
  %vm726 = vcmask 588800
  %v728 = vsel %vm726, %v442, 0
  %730 = vmatprep.subr.mxu0 0.0
  %731 = vmatpush1.msra.mxu0 0.0
  %732 = vmatprep.subr.mxu0 0.0
  %733 = vmatpush1.msra.mxu0 0.0
  %734 = vmatprep.subr.mxu0 0.0
  %735 = vmatpush1.msra.mxu0 0.0
  %736 = vmatprep.subr.mxu0 0.0
  %737 = vmatpush1.msra.mxu0 0.0
  %738 = vmatprep.subr.mxu0 0.0
  %739 = vmatpush1.msra.mxu0 0.0
  %740 = vmatprep.subr.mxu0 0.0
  %741 = vmatpush1.msra.mxu0 0.0
  %742 = vmatprep.subr.mxu0 0.0
  %743 = vmatpush1.msra.mxu0 0.0
  %744 = vmatprep.subr.mxu0 %v707
  %745 = vmatpush1.msra.mxu0 %v706
  %746 = vmatprep.subr.mxu0 %v705
  %747 = vmatpush1.msra.mxu0 %v704
  %748 = vmatprep.subr.mxu0 %v703
  %749 = vmatpush1.msra.mxu0 %v702
  %750 = vmatprep.subr.mxu0 %v701
  %751 = vmatpush1.msra.mxu0 %v700
  %752 = vmatprep.subr.mxu0 %v699
  %753 = vmatpush1.msra.mxu0 %v698
  %754 = vmatprep.subr.mxu0 %v697
  %755 = vmatpush1.msra.mxu0 %v696
  %756 = vmatprep.subr.mxu0 %v695
  %757 = vmatpush1.msra.mxu0 %v694
  %758 = vmatprep.subr.mxu0 %v693
  %759 = vmatpush1.msra.mxu0 %v692
  %760 = vmatprep.subr.mxu0 %v691
  %761 = vmatpush1.msra.mxu0 %v690
  %762 = vmatprep.subr.mxu0 0.0
  %763 = vmatpush2.msra.mxu0 0.0
  %764 = vmatprep.subr.mxu0 0.0
  %765 = vmatpush2.msra.mxu0 0.0
  %766 = vmatprep.subr.mxu0 0.0
  %767 = vmatpush2.msra.mxu0 0.0
  %768 = vmatprep.subr.mxu0 0.0
  %769 = vmatpush2.msra.mxu0 0.0
  %770 = vmatprep.subr.mxu0 0.0
  %771 = vmatpush2.msra.mxu0 0.0
  %772 = vmatprep.subr.mxu0 0.0
  %773 = vmatpush2.msra.mxu0 0.0
  %774 = vmatprep.subr.mxu0 0.0
  %775 = vmatpush2.msra.mxu0 0.0
  %776 = vmatprep.subr.mxu0 0.0
  %777 = vmatpush2.msra.mxu0 0.0
  %778 = vmatprep.subr.mxu0 0.0
  %779 = vmatpush2.msra.mxu0 0.0
  %780 = vmatprep.subr.mxu0 0.0
  %781 = vmatpush2.msra.mxu0 0.0
  %782 = vmatprep.subr.mxu0 0.0
  %783 = vmatpush2.msra.mxu0 0.0
  %784 = vmatprep.subr.mxu0 0.0
  %785 = vmatpush2.msra.mxu0 0.0
  %786 = vmatprep.subr.mxu0 0.0
  %787 = vmatpush2.msra.mxu0 0.0
  %788 = vmatprep.subr.mxu0 0.0
  %789 = vmatpush2.msra.mxu0 0.0
  %790 = vmatprep.subr.mxu0 0.0
  %791 = vmatpush2.msra.mxu0 0.0
  %792 = vmatprep.subr.mxu0 0.0
  %793 = vmatpush2.msra.mxu0 0.0
  %794 = vmatprep.mubr.f32.mxu0 0.0
  %795 = vmatmul.mubr.f32.gmra.mxu0 %v728
  %v796 = vpop.f32.mrf.mxu0
  %v797 = vadd.f32 %v631, %v796
  %v798 = vpop.f32.mrf.mxu0
  %v799 = vadd.f32 %v631, %v798
  %800 = vdwg.mxu0
  %v801 = vmax.f32 %v797, 0.0
  %v802 = vmax.f32 %v799, 0.0
  %803 = vst [vmem:[#allocation3 + $0x8] sm:$0xff] %v801
  %804 = vst [vmem:[#allocation3 + $0x10] sm:$0xff] %v802
  %v805 = vld [vmem:[%s13] sm:$0xff]
  %v806 = vld [vmem:[%s14] sm:$0xff]
  %v807 = vld [vmem:[#allocation3] sm:$0xff]
  %v808 = vld [vmem:[#allocation3 + $0x8] sm:$0xff]
  %v809 = vld [vmem:[#allocation3 + $0x10] sm:$0xff]
  %v810 = vmul.f32 %v807, %v457
  %v811 = vmul.f32 %v808, %v461
  %v812 = vmul.f32 %v809, %v459
  %v813 = vmul.f32 %v807, %v478
  %v814 = vmul.f32 %v808, %v482
  %v815 = vmul.f32 %v809, %v480
  %v816 = vmul.f32 %v807, %v490
  %v817 = vmul.f32 %v808, %v494
  %v818 = vmul.f32 %v809, %v492
  %v819 = vld [vmem:[#allocation3 + $0x8] sm:$0xff]
  %v820 = vld [vmem:[#allocation3 + $0x10] sm:$0xff]
  %v821 = vld [vmem:[#allocation3 + $0x18] sm:$0xff]
  %v822 = vmul.f32 %v819, %v505
  %v823 = vmul.f32 %v820, %v509
  %v824 = vmul.f32 %v821, %v507
  %v825 = vmul.f32 %v819, %v517
  %v826 = vmul.f32 %v820, %v521
  %v827 = vmul.f32 %v821, %v519
  %v828 = vmul.f32 %v819, %v529
  %v829 = vmul.f32 %v820, %v533
  %v830 = vmul.f32 %v821, %v531
  %834 = vrot.lane.b32.xlu0 %v807, 127
  %v835 = vpop.permute.xlu0 %834
  %836 = vrot.lane.b32.xlu0 %v808, 127
  %v837 = vpop.permute.xlu0 %836
  %838 = vrot.lane.b32.xlu0 %v809, 127
  %v839 = vpop.permute.xlu0 %838
  %v840 = vsel %vm493, %v835, %v837
  %v841 = vsel %vm493, %v837, %v839
  %845 = vrot.lane.b32.xlu0 %v813, 126
  %v846 = vpop.permute.xlu0 %845
  %847 = vrot.lane.b32.xlu0 %v814, 126
  %v848 = vpop.permute.xlu0 %847
  %849 = vrot.lane.b32.xlu0 %v815, 126
  %v850 = vpop.permute.xlu0 %849
  %v851 = vsel %vm560, %v846, %v848
  %v852 = vsel %vm560, %v848, %v850
  %856 = vrot.lane.b32.xlu0 %v816, 112
  %v857 = vpop.permute.xlu0 %856
  %858 = vrot.lane.b32.xlu0 %v817, 112
  %v859 = vpop.permute.xlu0 %858
  %860 = vrot.lane.b32.xlu0 %v818, 112
  %v861 = vpop.permute.xlu0 %860
  %v862 = vsel %vm572, %v857, %v859
  %v863 = vsel %vm572, %v859, %v861
  %864 = vrot.lane.b32.xlu0 %v808, 111
  %v865 = vpop.permute.xlu0 %864
  %866 = vrot.lane.b32.xlu0 %v809, 111
  %v867 = vpop.permute.xlu0 %866
  %v868 = vsel %vm460, %v865, %v867
  %872 = vrot.lane.b32.xlu0 %v822, 110
  %v873 = vpop.permute.xlu0 %872
  %874 = vrot.lane.b32.xlu0 %v823, 110
  %v875 = vpop.permute.xlu0 %874
  %876 = vrot.lane.b32.xlu0 %v824, 110
  %v877 = vpop.permute.xlu0 %876
  %v878 = vsel %vm589, %v873, %v875
  %v879 = vsel %vm589, %v875, %v877
  %883 = vrot.lane.b32.xlu0 %v825, 96
  %v884 = vpop.permute.xlu0 %883
  %885 = vrot.lane.b32.xlu0 %v826, 96
  %v886 = vpop.permute.xlu0 %885
  %887 = vrot.lane.b32.xlu0 %v827, 96
  %v888 = vpop.permute.xlu0 %887
  %v889 = vsel %vm601, %v884, %v886
  %v890 = vsel %vm601, %v886, %v888
  %894 = vrot.lane.b32.xlu0 %v819, 95
  %v895 = vpop.permute.xlu0 %894
  %896 = vrot.lane.b32.xlu0 %v820, 95
  %v897 = vpop.permute.xlu0 %896
  %898 = vrot.lane.b32.xlu0 %v821, 95
  %v899 = vpop.permute.xlu0 %898
  %v900 = vsel %vm613, %v895, %v897
  %v901 = vsel %vm613, %v897, %v899
  %905 = vrot.lane.b32.xlu0 %v828, 94
  %v906 = vpop.permute.xlu0 %905
  %907 = vrot.lane.b32.xlu0 %v829, 94
  %v908 = vpop.permute.xlu0 %907
  %909 = vrot.lane.b32.xlu0 %v830, 94
  %v910 = vpop.permute.xlu0 %909
  %v911 = vsel %vm625, %v906, %v908
  %v912 = vsel %vm625, %v908, %v910
  %914 = vset.pattern.permute.xlu0 0
  %915 = vperm.xlu0 %914, %v806
  %v916 = vpop.permute.xlu0 %915
  %921 = vrot.lane.b32.xlu0 %v810, 17
  %v922 = vpop.permute.xlu0 %921
  %923 = vrot.lane.b32.xlu0 %v811, 17
  %v924 = vpop.permute.xlu0 %923
  %925 = vrot.lane.b32.xlu0 %v812, 17
  %v926 = vpop.permute.xlu0 %925
  %927 = vrot.lane.b32.xlu0 %v840, 17
  %v928 = vpop.permute.xlu0 %927
  %929 = vrot.lane.b32.xlu0 %v841, 17
  %v930 = vpop.permute.xlu0 %929
  %931 = vrot.lane.b32.xlu0 %v839, 17
  %v932 = vpop.permute.xlu0 %931
  %933 = vrot.lane.b32.xlu0 %v851, 17
  %v934 = vpop.permute.xlu0 %933
  %935 = vrot.lane.b32.xlu0 %v852, 17
  %v936 = vpop.permute.xlu0 %935
  %937 = vrot.lane.b32.xlu0 %v850, 17
  %v938 = vpop.permute.xlu0 %937
  %939 = vrot.lane.b32.xlu0 %v862, 17
  %v940 = vpop.permute.xlu0 %939
  %941 = vrot.lane.b32.xlu0 %v863, 17
  %v942 = vpop.permute.xlu0 %941
  %943 = vrot.lane.b32.xlu0 %v861, 17
  %v944 = vpop.permute.xlu0 %943
  %945 = vrot.lane.b32.xlu0 %v865, 17
  %v946 = vpop.permute.xlu0 %945
  %947 = vrot.lane.b32.xlu0 %v868, 17
  %v948 = vpop.permute.xlu0 %947
  %949 = vrot.lane.b32.xlu0 %v867, 17
  %v950 = vpop.permute.xlu0 %949
  %951 = vrot.lane.b32.xlu0 %v873, 17
  %v952 = vpop.permute.xlu0 %951
  %953 = vrot.lane.b32.xlu0 %v878, 17
  %v954 = vpop.permute.xlu0 %953
  %955 = vrot.lane.b32.xlu0 %v879, 17
  %v956 = vpop.permute.xlu0 %955
  %957 = vrot.lane.b32.xlu0 %v884, 17
  %v958 = vpop.permute.xlu0 %957
  %959 = vrot.lane.b32.xlu0 %v889, 17
  %v960 = vpop.permute.xlu0 %959
  %961 = vrot.lane.b32.xlu0 %v890, 17
  %v962 = vpop.permute.xlu0 %961
  %963 = vrot.lane.b32.xlu0 %v895, 17
  %v964 = vpop.permute.xlu0 %963
  %965 = vrot.lane.b32.xlu0 %v900, 17
  %v966 = vpop.permute.xlu0 %965
  %967 = vrot.lane.b32.xlu0 %v901, 17
  %v968 = vpop.permute.xlu0 %967
  %969 = vrot.lane.b32.xlu0 %v906, 17
  %v970 = vpop.permute.xlu0 %969
  %971 = vrot.lane.b32.xlu0 %v911, 17
  %v972 = vpop.permute.xlu0 %971
  %973 = vrot.lane.b32.xlu0 %v912, 17
  %v974 = vpop.permute.xlu0 %973
  %v975 = vsel %vm532, %v922, %v924
  %v976 = vsel %vm532, %v924, %v926
  %v977 = vsel %vm532, %v928, %v930
  %v978 = vsel %vm532, %v930, %v932
  %v979 = vsel %vm532, %v934, %v936
  %v980 = vsel %vm532, %v936, %v938
  %v981 = vsel %vm532, %v940, %v942
  %v982 = vsel %vm532, %v942, %v944
  %v983 = vsel %vm532, %v946, %v948
  %v984 = vsel %vm532, %v948, %v950
  %v985 = vsel %vm532, %v952, %v954
  %v986 = vsel %vm532, %v954, %v956
  %v987 = vsel %vm532, %v958, %v960
  %v988 = vsel %vm532, %v960, %v962
  %v989 = vsel %vm532, %v964, %v966
  %v990 = vsel %vm532, %v966, %v968
  %v991 = vsel %vm532, %v970, %v972
  %v992 = vsel %vm532, %v972, %v974
  %v1012 = vsel %vm726, %v805, 0
  %1014 = vmatprep.subr.mxu0 0.0
  %1015 = vmatpush1.msra.mxu0 0.0
  %1016 = vmatprep.subr.mxu0 0.0
  %1017 = vmatpush1.msra.mxu0 0.0
  %1018 = vmatprep.subr.mxu0 0.0
  %1019 = vmatpush1.msra.mxu0 0.0
  %1020 = vmatprep.subr.mxu0 0.0
  %1021 = vmatpush1.msra.mxu0 0.0
  %1022 = vmatprep.subr.mxu0 0.0
  %1023 = vmatpush1.msra.mxu0 0.0
  %1024 = vmatprep.subr.mxu0 0.0
  %1025 = vmatpush1.msra.mxu0 0.0
  %1026 = vmatprep.subr.mxu0 0.0
  %1027 = vmatpush1.msra.mxu0 0.0
  %1028 = vmatprep.subr.mxu0 %v992
  %1029 = vmatpush1.msra.mxu0 %v991
  %1030 = vmatprep.subr.mxu0 %v990
  %1031 = vmatpush1.msra.mxu0 %v989
  %1032 = vmatprep.subr.mxu0 %v988
  %1033 = vmatpush1.msra.mxu0 %v987
  %1034 = vmatprep.subr.mxu0 %v986
  %1035 = vmatpush1.msra.mxu0 %v985
  %1036 = vmatprep.subr.mxu0 %v984
  %1037 = vmatpush1.msra.mxu0 %v983
  %1038 = vmatprep.subr.mxu0 %v982
  %1039 = vmatpush1.msra.mxu0 %v981
  %1040 = vmatprep.subr.mxu0 %v980
  %1041 = vmatpush1.msra.mxu0 %v979
  %1042 = vmatprep.subr.mxu0 %v978
  %1043 = vmatpush1.msra.mxu0 %v977
  %1044 = vmatprep.subr.mxu0 %v976
  %1045 = vmatpush1.msra.mxu0 %v975
  %1046 = vmatprep.subr.mxu0 0.0
  %1047 = vmatpush2.msra.mxu0 0.0
  %1048 = vmatprep.subr.mxu0 0.0
  %1049 = vmatpush2.msra.mxu0 0.0
  %1050 = vmatprep.subr.mxu0 0.0
  %1051 = vmatpush2.msra.mxu0 0.0
  %1052 = vmatprep.subr.mxu0 0.0
  %1053 = vmatpush2.msra.mxu0 0.0
  %1054 = vmatprep.subr.mxu0 0.0
  %1055 = vmatpush2.msra.mxu0 0.0
  %1056 = vmatprep.subr.mxu0 0.0
  %1057 = vmatpush2.msra.mxu0 0.0
  %1058 = vmatprep.subr.mxu0 0.0
  %1059 = vmatpush2.msra.mxu0 0.0
  %1060 = vmatprep.subr.mxu0 0.0
  %1061 = vmatpush2.msra.mxu0 0.0
  %1062 = vmatprep.subr.mxu0 0.0
  %1063 = vmatpush2.msra.mxu0 0.0
  %1064 = vmatprep.subr.mxu0 0.0
  %1065 = vmatpush2.msra.mxu0 0.0
  %1066 = vmatprep.subr.mxu0 0.0
  %1067 = vmatpush2.msra.mxu0 0.0
  %1068 = vmatprep.subr.mxu0 0.0
  %1069 = vmatpush2.msra.mxu0 0.0
  %1070 = vmatprep.subr.mxu0 0.0
  %1071 = vmatpush2.msra.mxu0 0.0
  %1072 = vmatprep.subr.mxu0 0.0
  %1073 = vmatpush2.msra.mxu0 0.0
  %1074 = vmatprep.subr.mxu0 0.0
  %1075 = vmatpush2.msra.mxu0 0.0
  %1076 = vmatprep.subr.mxu0 0.0
  %1077 = vmatpush2.msra.mxu0 0.0
  %1078 = vmatprep.mubr.f32.mxu0 0.0
  %1079 = vmatmul.mubr.f32.gmra.mxu0 %v1012
  %v1080 = vpop.f32.mrf.mxu0
  %v1081 = vadd.f32 %v916, %v1080
  %v1082 = vpop.f32.mrf.mxu0
  %v1083 = vadd.f32 %v916, %v1082
  %1084 = vdwg.mxu0
  %v1085 = vmax.f32 %v1081, 0.0
  %v1086 = vmax.f32 %v1083, 0.0
  %1087 = vst [vmem:[%s15] sm:$0xff] %v1085
  %1088 = vst [vmem:[%s15 + $0x8] sm:$0xff] %v1086
  // Predicated region
  $region62: #{alexnet_upsampling_forward.1} parent=0 // pred_check
    _
  $region63: #{alexnet_upsampling_forward.1} parent=0 // pred_check_branch
    %1090 = sbr.rel (0) target = $region65
  $region64: #{alexnet_upsampling_forward.1} parent=0 // pred_region
    _
  $region65: #{alexnet_upsampling_forward.1} parent=0 // pred_fallthru
    _
  // Predicated region
  $region66: #{alexnet_upsampling_forward.1} parent=0 // pred_check
    _
  $region67: #{alexnet_upsampling_forward.1} parent=0 // pred_check_branch
    %1092 = sbr.rel (0) target = $region69
  $region68: #{alexnet_upsampling_forward.1} parent=0 // pred_region
    _
  $region69: #{alexnet_upsampling_forward.1} parent=0 // pred_fallthru
    _

</llo_original>
